<compile_context>
chip_gen: v6e
topology: v6e:2x2x1
jax: 0.10.0
libtpu: 0.0.40
codegen_flags: <defaults>
</compile_context>

<pallas_src>
import jax
import jax.numpy as jnp
from jax.experimental import pallas as pl
from jax.experimental.pallas import tpu as pltpu

EMBED_DIM = 32
NUM_HEADS = 4
HEAD_DIM = EMBED_DIM // NUM_HEADS


def _make_kernel(B, N, S, C, H):
    """Single-step kernel: all batches & heads in 4 batched MXU dot_generals."""

    def kernel(x_ref, ctx_ref, a_ref, b_ref, bias_ref, o_ref):
        A = a_ref[...]        # (H, C, C)  fused scale * Wq_h @ Wk_h^T
        Bw = b_ref[...]       # (H, C, C)  fused Wv_h @ Wo_h
        bias = bias_ref[...]  # (1, C)

        # Fold batch into the sublane (row) axis once; N and S are multiples
        # of 8 so these reshapes are layout-preserving.
        x = x_ref[...].reshape(B * N, C)          # (B*N, C)
        c = ctx_ref[...].reshape(B * S, C)        # (B*S, C)

        # Head-batched fused "projections", hoisted over all batches
        # (one leading-dim broadcast each; no per-batch Python unroll).
        xh = jnp.broadcast_to(x, (H, B * N, C))
        ch = jnp.broadcast_to(c, (H, B * S, C))
        tmp = jnp.einsum('hmc,hce->hme', xh, A,
                         preferred_element_type=jnp.float32)     # (H, B*N, C)
        u = jnp.einsum('hpc,hce->hpe', ch, Bw,
                       preferred_element_type=jnp.float32)       # (H, B*S, C)

        # Fold (head, batch) into a single leading batch axis g = h*B + b.
        tmp_g = tmp.reshape(H * B, N, C)
        u_g = u.reshape(H * B, S, C)
        ctx_g = ch.reshape(H * B, S, C)

        # Attention scores (scale already folded into A).
        scores = jnp.einsum('gnc,gsc->gns', tmp_g, ctx_g,
                            preferred_element_type=jnp.float32)  # (H*B, N, S)

        # Softmax over the HEAD axis (dim=-1 of 'bnsh' in the PyTorch module)
        # == leading axis here -> cheap element-wise reductions over H blocks.
        s4 = scores.reshape(H, B, N, S)
        m = jnp.max(s4, axis=0, keepdims=True)                   # (1, B, N, S)
        e = jnp.exp(s4 - m)                                      # (H, B, N, S)
        denom = jnp.sum(e, axis=0, keepdims=True)                # (1, B, N, S)
        probs = (e * pl.reciprocal(denom)).reshape(H * B, N, S)  # exact recip

        # Weighted sum against the fused V*Wo path, then reduce over heads.
        out_g = jnp.einsum('gns,gsc->gnc', probs, u_g,
                           preferred_element_type=jnp.float32)   # (H*B, N, C)
        out = jnp.sum(out_g.reshape(H, B, N, C), axis=0)         # (B, N, C)
        o_ref[...] = (out + bias.reshape(1, 1, C)).astype(o_ref.dtype)

    return kernel


def cross_attention(x, context, wq, wk, wv, wo, bo, *, num_heads=NUM_HEADS):
    B, N, C = x.shape
    S = context.shape[1]
    H = num_heads
    D = C // H
    scale = float(D) ** (-0.5)

    # Per-head slices of the PyTorch Linear weights (y = x @ W^T).
    wq_h = wq.T.reshape(C, H, D).transpose(1, 0, 2)   # (H, C, D)
    wk_h = wk.T.reshape(C, H, D).transpose(1, 0, 2)   # (H, C, D)
    wv_h = wv.T.reshape(C, H, D).transpose(1, 0, 2)   # (H, C, D)
    wo_h = wo.T.reshape(H, D, C)                      # (H, D, C)

    # One-time algebraic weight fusion (wrapper side, HIGHEST precision so the
    # fusion adds no rounding error vs. the unfused reference):
    #   scores[b,h] = (x[b] @ A[h]) @ ctx[b]^T      A[h]  = scale * Wq_h Wk_h^T
    #   out[b]      = sum_h probs[b,h] @ (ctx[b] @ Bm[h]) + bias
    #                                               Bm[h] = Wv_h Wo_h
    hp = jax.lax.Precision.HIGHEST
    A = jnp.einsum('hcd,hed->hce', wq_h, wk_h, precision=hp) * scale   # (H, C, C)
    Bm = jnp.einsum('hcd,hde->hce', wv_h, wo_h, precision=hp)          # (H, C, C)
    bo2 = bo.reshape(1, C)

    kernel = _make_kernel(B, N, S, C, H)

    # Whole problem (x 4 KB, ctx 2 KB, fused weights 32 KB) fits trivially in
    # VMEM on every generation; the workload is launch / MXU-issue-latency
    # bound, so a single grid step is fastest on v5e / v6e / v7x alike.
    return pl.pallas_call(
        kernel,
        out_shape=jax.ShapeDtypeStruct((B, N, C), x.dtype),
        grid_spec=pltpu.PrefetchScalarGridSpec(
            num_scalar_prefetch=0,
            grid=(1,),
            in_specs=[
                pl.BlockSpec((B, N, C), lambda g: (0, 0, 0)),   # x
                pl.BlockSpec((B, S, C), lambda g: (0, 0, 0)),   # context
                pl.BlockSpec((H, C, C), lambda g: (0, 0, 0)),   # fused A
                pl.BlockSpec((H, C, C), lambda g: (0, 0, 0)),   # fused Bm
                pl.BlockSpec((1, C), lambda g: (0, 0)),         # output bias
            ],
            out_specs=pl.BlockSpec((B, N, C), lambda g: (0, 0, 0)),
        ),
        compiler_params=pltpu.CompilerParams(
            dimension_semantics=("arbitrary",)),
    )(x, context, A, Bm, bo2)


if __name__ == "__main__":
    B, N, S, C = 2, 16, 8, EMBED_DIM

    key = jax.random.PRNGKey(0)
    kx, kc, k1, k2, k3, k4, k5 = jax.random.split(key, 7)
    x = jax.random.normal(kx, (B, N, C), jnp.float32)
    context = jax.random.normal(kc, (B, S, C), jnp.float32)

    # Deterministic synthetic params (PyTorch Linear-style uniform init).
    bound = 1.0 / (C ** 0.5)
    wq = jax.random.uniform(k1, (C, C), jnp.float32, -bound, bound)
    wk = jax.random.uniform(k2, (C, C), jnp.float32, -bound, bound)
    wv = jax.random.uniform(k3, (C, C), jnp.float32, -bound, bound)
    wo = jax.random.uniform(k4, (C, C), jnp.float32, -bound, bound)
    bo = jax.random.uniform(k5, (C,), jnp.float32, -bound, bound)

    out = cross_attention(x, context, wq, wk, wv, wo, bo)
    out = jax.block_until_ready(out)

    # Pure-JAX reference (mirrors the PyTorch forward exactly).
    def reference(x, ctx):
        H, D = NUM_HEADS, HEAD_DIM
        q = (x @ wq.T).reshape(B, N, H, D)
        k = (ctx @ wk.T).reshape(B, S, H, D)
        v = (ctx @ wv.T).reshape(B, S, H, D)
        scores = jnp.einsum('bnhd,bshd->bnsh', q, k) * (D ** -0.5)
        probs = jax.nn.softmax(scores, axis=-1)   # softmax over heads, as in the module
        attn = jnp.einsum('bnsh,bshd->bnhd', probs, v).reshape(B, N, C)
        return attn @ wo.T + bo

    ref = reference(x, context)
    assert jnp.allclose(out, ref, atol=1e-4, rtol=1e-4), \
        f"max abs err {float(jnp.max(jnp.abs(out - ref)))}"
    print("KERNEL_OK")
</pallas_src>

<mosaic_0001>
module attributes {stable_mosaic.version = 11 : i64} {
  func.func @kernel(%arg0: i32, %arg1: memref<2x16x32xf32, #tpu.memory_space<vmem>>, %arg2: memref<2x8x32xf32, #tpu.memory_space<vmem>>, %arg3: memref<4x32x32xf32, #tpu.memory_space<vmem>>, %arg4: memref<4x32x32xf32, #tpu.memory_space<vmem>>, %arg5: memref<1x32xf32, #tpu.memory_space<vmem>>, %arg6: memref<2x16x32xf32, #tpu.memory_space<vmem>>) attributes {dimension_semantics = [#tpu.dimension_semantics<arbitrary>], iteration_bounds = array<i64: 1>, scalar_prefetch = 0 : i64, scratch_operands = 0 : i64, tpu.core_type = #tpu.core_type<tc>, window_params = [{pipeline_mode = #tpu.pipeline_mode<synchronous>, transform_indices = @transform_0, window_bounds = array<i64: 2, 16, 32>}, {pipeline_mode = #tpu.pipeline_mode<synchronous>, transform_indices = @transform_1, window_bounds = array<i64: 2, 8, 32>}, {pipeline_mode = #tpu.pipeline_mode<synchronous>, transform_indices = @transform_2, window_bounds = array<i64: 4, 32, 32>}, {pipeline_mode = #tpu.pipeline_mode<synchronous>, transform_indices = @transform_3, window_bounds = array<i64: 4, 32, 32>}, {pipeline_mode = #tpu.pipeline_mode<synchronous>, transform_indices = @transform_4, window_bounds = array<i64: 1, 32>}, {pipeline_mode = #tpu.pipeline_mode<synchronous>, transform_indices = @transform_5, window_bounds = array<i64: 2, 16, 32>}]} {
    %c0 = arith.constant 0 : index
    %c0_0 = arith.constant 0 : index
    %c0_1 = arith.constant 0 : index
    %0 = vector.load %arg3[%c0, %c0_0, %c0_1] : memref<4x32x32xf32, #tpu.memory_space<vmem>>, vector<4x32x32xf32>
    %c0_2 = arith.constant 0 : index
    %c0_3 = arith.constant 0 : index
    %c0_4 = arith.constant 0 : index
    %1 = vector.load %arg4[%c0_2, %c0_3, %c0_4] : memref<4x32x32xf32, #tpu.memory_space<vmem>>, vector<4x32x32xf32>
    %c0_5 = arith.constant 0 : index
    %c0_6 = arith.constant 0 : index
    %2 = vector.load %arg5[%c0_5, %c0_6] : memref<1x32xf32, #tpu.memory_space<vmem>>, vector<1x32xf32>
    %c0_7 = arith.constant 0 : index
    %c0_8 = arith.constant 0 : index
    %c0_9 = arith.constant 0 : index
    %3 = vector.load %arg1[%c0_7, %c0_8, %c0_9] : memref<2x16x32xf32, #tpu.memory_space<vmem>>, vector<2x16x32xf32>
    %4 = vector.shape_cast %3 : vector<2x16x32xf32> to vector<32x32xf32>
    %c0_10 = arith.constant 0 : index
    %c0_11 = arith.constant 0 : index
    %c0_12 = arith.constant 0 : index
    %5 = vector.load %arg2[%c0_10, %c0_11, %c0_12] : memref<2x8x32xf32, #tpu.memory_space<vmem>>, vector<2x8x32xf32>
    %6 = vector.shape_cast %5 : vector<2x8x32xf32> to vector<16x32xf32>
    %7 = vector.shape_cast %4 : vector<32x32xf32> to vector<1x32x32xf32>
    %8 = vector.broadcast %7 : vector<1x32x32xf32> to vector<4x32x32xf32>
    %9 = vector.shape_cast %6 : vector<16x32xf32> to vector<1x16x32xf32>
    %10 = vector.broadcast %9 : vector<1x16x32xf32> to vector<4x16x32xf32>
    "tpu.trace_start"() <{level = 10 : i32, message = "hmc,hce->hme"}> : () -> ()
    %cst = arith.constant dense<0.000000e+00> : vector<4x32x32xf32>
    %11 = tpu.matmul %8, %0, %cst {dimension_numbers = #tpu.dot_dimension_numbers<[2], [1], [1], [2], [0, 0, 0, 1, 1, 2], [0], [0]>} : vector<4x32x32xf32>, vector<4x32x32xf32>, vector<4x32x32xf32> -> vector<4x32x32xf32>
    "tpu.trace_stop"() : () -> ()
    "tpu.trace_start"() <{level = 10 : i32, message = "hpc,hce->hpe"}> : () -> ()
    %cst_13 = arith.constant dense<0.000000e+00> : vector<4x16x32xf32>
    %12 = tpu.matmul %10, %1, %cst_13 {dimension_numbers = #tpu.dot_dimension_numbers<[2], [1], [1], [2], [0, 0, 0, 1, 1, 2], [0], [0]>} : vector<4x16x32xf32>, vector<4x32x32xf32>, vector<4x16x32xf32> -> vector<4x16x32xf32>
    "tpu.trace_stop"() : () -> ()
    %13 = vector.shape_cast %11 : vector<4x32x32xf32> to vector<8x16x32xf32>
    %14 = vector.shape_cast %12 : vector<4x16x32xf32> to vector<8x8x32xf32>
    %15 = vector.shape_cast %10 : vector<4x16x32xf32> to vector<8x8x32xf32>
    "tpu.trace_start"() <{level = 10 : i32, message = "gnc,gsc->gns"}> : () -> ()
    %cst_14 = arith.constant dense<0.000000e+00> : vector<8x16x8xf32>
    %16 = tpu.matmul %13, %15, %cst_14 {dimension_numbers = #tpu.dot_dimension_numbers<[2], [2], [1], [1], [0, 0, 0, 1, 1, 1], [0], [0]>} : vector<8x16x32xf32>, vector<8x8x32xf32>, vector<8x16x8xf32> -> vector<8x16x8xf32>
    "tpu.trace_stop"() : () -> ()
    %17 = vector.shape_cast %16 : vector<8x16x8xf32> to vector<4x2x16x8xf32>
    %cst_15 = arith.constant dense<0xFF800000> : vector<2x16x8xf32>
    %18 = vector.multi_reduction <maximumf>, %17, %cst_15 [0] : vector<4x2x16x8xf32> to vector<2x16x8xf32>
    %19 = vector.shape_cast %18 : vector<2x16x8xf32> to vector<1x2x16x8xf32>
    %20 = vector.broadcast %19 : vector<1x2x16x8xf32> to vector<4x2x16x8xf32>
    %21 = arith.subf %17, %20 : vector<4x2x16x8xf32>
    %22 = math.exp %21 : vector<4x2x16x8xf32>
    %cst_16 = arith.constant dense<0.000000e+00> : vector<2x16x8xf32>
    %23 = vector.multi_reduction <add>, %22, %cst_16 [0] : vector<4x2x16x8xf32> to vector<2x16x8xf32>
    %24 = vector.shape_cast %23 : vector<2x16x8xf32> to vector<1x2x16x8xf32>
    %25 = tpu.reciprocal %24 : vector<1x2x16x8xf32> -> vector<1x2x16x8xf32>
    %26 = vector.broadcast %25 : vector<1x2x16x8xf32> to vector<4x2x16x8xf32>
    %27 = arith.mulf %22, %26 : vector<4x2x16x8xf32>
    %28 = vector.shape_cast %27 : vector<4x2x16x8xf32> to vector<8x16x8xf32>
    "tpu.trace_start"() <{level = 10 : i32, message = "gns,gsc->gnc"}> : () -> ()
    %cst_17 = arith.constant dense<0.000000e+00> : vector<8x16x32xf32>
    %29 = tpu.matmul %28, %14, %cst_17 {dimension_numbers = #tpu.dot_dimension_numbers<[2], [1], [1], [2], [0, 0, 0, 1, 1, 2], [0], [0]>} : vector<8x16x8xf32>, vector<8x8x32xf32>, vector<8x16x32xf32> -> vector<8x16x32xf32>
    "tpu.trace_stop"() : () -> ()
    %30 = vector.shape_cast %29 : vector<8x16x32xf32> to vector<4x2x16x32xf32>
    %cst_18 = arith.constant dense<0.000000e+00> : vector<2x16x32xf32>
    %31 = vector.multi_reduction <add>, %30, %cst_18 [0] : vector<4x2x16x32xf32> to vector<2x16x32xf32>
    %32 = vector.shape_cast %2 : vector<1x32xf32> to vector<1x1x32xf32>
    %33 = vector.broadcast %32 : vector<1x1x32xf32> to vector<2x16x32xf32>
    %34 = arith.addf %31, %33 : vector<2x16x32xf32>
    %c0_19 = arith.constant 0 : index
    %c0_20 = arith.constant 0 : index
    %c0_21 = arith.constant 0 : index
    %35 = vector.load %arg6[%c0_19, %c0_20, %c0_21] : memref<2x16x32xf32, #tpu.memory_space<vmem>>, vector<2x16x32xf32>
    tpu.vector_store %arg6[%c0_19, %c0_20, %c0_21], %34 {strides = array<i32>} : memref<2x16x32xf32, #tpu.memory_space<vmem>>, vector<2x16x32xf32>,
    return
  }
  func.func @transform_0(%arg0: i32) -> (i32, i32, i32) {
    %c0_i32 = arith.constant 0 : i32
    %c0_i32_0 = arith.constant 0 : i32
    %c0_i32_1 = arith.constant 0 : i32
    %c0_i32_2 = arith.constant 0 : i32
    return %c0_i32, %c0_i32_0, %c0_i32_1 : i32, i32, i32
  }
  func.func @transform_1(%arg0: i32) -> (i32, i32, i32) {
    %c0_i32 = arith.constant 0 : i32
    %c0_i32_0 = arith.constant 0 : i32
    %c0_i32_1 = arith.constant 0 : i32
    %c0_i32_2 = arith.constant 0 : i32
    return %c0_i32, %c0_i32_0, %c0_i32_1 : i32, i32, i32
  }
  func.func @transform_2(%arg0: i32) -> (i32, i32, i32) {
    %c0_i32 = arith.constant 0 : i32
    %c0_i32_0 = arith.constant 0 : i32
    %c0_i32_1 = arith.constant 0 : i32
    %c0_i32_2 = arith.constant 0 : i32
    return %c0_i32, %c0_i32_0, %c0_i32_1 : i32, i32, i32
  }
  func.func @transform_3(%arg0: i32) -> (i32, i32, i32) {
    %c0_i32 = arith.constant 0 : i32
    %c0_i32_0 = arith.constant 0 : i32
    %c0_i32_1 = arith.constant 0 : i32
    %c0_i32_2 = arith.constant 0 : i32
    return %c0_i32, %c0_i32_0, %c0_i32_1 : i32, i32, i32
  }
  func.func @transform_4(%arg0: i32) -> (i32, i32) {
    %c0_i32 = arith.constant 0 : i32
    %c0_i32_0 = arith.constant 0 : i32
    %c0_i32_1 = arith.constant 0 : i32
    return %c0_i32, %c0_i32_0 : i32, i32
  }
  func.func @transform_5(%arg0: i32) -> (i32, i32, i32) {
    %c0_i32 = arith.constant 0 : i32
    %c0_i32_0 = arith.constant 0 : i32
    %c0_i32_1 = arith.constant 0 : i32
    %c0_i32_2 = arith.constant 0 : i32
    return %c0_i32, %c0_i32_0, %c0_i32_1 : i32, i32, i32
  }
}

</mosaic_0001>

<llo_original>
// kernel: tpu_custom_call.1
$region0: #{tpu_custom_call.1}
  #allocation0 [shape = 'u32[]', space=smem, size = 0x4, offset = 0x4, fixed_abs, tag = 'smem constant byte address 0x4 - core index']
  #allocation1 [shape = 'u32[144,128]{1,0:T(1,128)}', space=vmem, size = 0x12000, scoped, tag = 'internal scratch']
  %s0 = inlined_call_operand.hbm [shape: f32[2,16,32], index: 0, kind: input, shape index: {}]
  %s1 = inlined_call_operand.hbm [shape: f32[2,8,32], index: 1, kind: input, shape index: {}]
  %s2 = inlined_call_operand.hbm [shape: f32[4,32,32], index: 2, kind: input, shape index: {}]
  %s3 = inlined_call_operand.hbm [shape: f32[4,32,32], index: 3, kind: input, shape index: {}]
  %s4 = inlined_call_operand.vmem [shape: f32[1,32], index: 4, kind: input, shape index: {}]
  %s5 = inlined_call_operand.hbm [shape: f32[2,16,32], index: 5, kind: output, shape index: {}]
  %s6 = sld [smem:[#allocation0]]
  $region46: #{tpu_custom_call.1} parent=0
    _
  %s8 = ssub.s32 1, %s6
  %s9 = scalar_select 0, %s8, %s6
  $region1: #{tpu_custom_call.1} parent=0
    #allocation2 [shape = 'u8[16384]{0}', space=vmem, size = 0x4000, scoped, tag = 'input window, operand 0, single buffered']
    #allocation3 [shape = 's32[1]{0}', space=sflag, size = 0x4, scoped, tag = 'scoped memory for tpu_custom_call.1']
    #allocation4 [shape = 's32[1]{0}', space=sflag, size = 0x4, scoped, tag = 'scoped memory for tpu_custom_call.1']
    #allocation5 [shape = 'u8[8192]{0}', space=vmem, size = 0x2000, scoped, tag = 'input window, operand 1, single buffered']
    #allocation6 [shape = 's32[1]{0}', space=sflag, size = 0x4, scoped, tag = 'scoped memory for tpu_custom_call.1']
    #allocation7 [shape = 'u8[65536]{0}', space=vmem, size = 0x10000, scoped, tag = 'input window, operand 2, single buffered']
    #allocation8 [shape = 'u8[65536]{0}', space=vmem, size = 0x10000, scoped, tag = 'input window, operand 3, single buffered']
    #allocation9 [shape = 's32[1]{0}', space=sflag, size = 0x4, scoped, tag = 'scoped memory for tpu_custom_call.1']
    #allocation10 [shape = 'u8[16384]{0}', space=vmem, size = 0x4000, scoped, tag = 'output window, operand 0, single buffered']
    %10 = vsyncpa [#allocation3], 0
    %11 = vsyncpa [#allocation6], 0
    %12 = vsyncpa [#allocation9], 0
    %13 = vsyncpa [#allocation4], 0
    // Predicated region
    $region2: #{tpu_custom_call.1} parent=1 // pred_check
      _
    $region3: #{tpu_custom_call.1} parent=1 // pred_check_branch
      %15 = sbr.rel (0) target = $region5
    $region4: #{tpu_custom_call.1} parent=1 // pred_region
      %s17 = ssub.s32 512, 512
      %18 = vsyncadd [#allocation3], %s17
      %s19 = sshll.u32 [#allocation2], 4
      %s20 = int_to_ptr.vmem [resolvable:$true] %s19
      %25 = dma.hbm_to_vmem [thread:$0]  %s0, 512, %s20, [#allocation3], 128, 128, 8
    $region5: #{tpu_custom_call.1} parent=1 // pred_fallthru
      _
    // Predicated region
    $region6: #{tpu_custom_call.1} parent=1 // pred_check
      _
    $region7: #{tpu_custom_call.1} parent=1 // pred_check_branch
      %27 = sbr.rel (0) target = $region9
    $region8: #{tpu_custom_call.1} parent=1 // pred_region
      %s29 = ssub.s32 256, 256
      %30 = vsyncadd [#allocation6], %s29
      %s31 = sshll.u32 [#allocation5], 4
      %s32 = int_to_ptr.vmem [resolvable:$true] %s31
      %37 = dma.hbm_to_vmem [thread:$0]  %s1, 256, %s32, [#allocation6], 128, 128, 8
    $region9: #{tpu_custom_call.1} parent=1 // pred_fallthru
      _
    // Predicated region
    $region10: #{tpu_custom_call.1} parent=1 // pred_check
      _
    $region11: #{tpu_custom_call.1} parent=1 // pred_check_branch
      %39 = sbr.rel (0) target = $region13
    $region12: #{tpu_custom_call.1} parent=1 // pred_region
      %s41 = ssub.s32 2048, 2048
      %42 = vsyncadd [#allocation6], %s41
      %s43 = sshll.u32 [#allocation7], 4
      %s44 = int_to_ptr.vmem [resolvable:$true] %s43
      %49 = dma.hbm_to_vmem [thread:$0]  %s2, 2048, %s44, [#allocation6], 128, 128, 8
    $region13: #{tpu_custom_call.1} parent=1 // pred_fallthru
      _
    // Predicated region
    $region14: #{tpu_custom_call.1} parent=1 // pred_check
      _
    $region15: #{tpu_custom_call.1} parent=1 // pred_check_branch
      %51 = sbr.rel (0) target = $region17
    $region16: #{tpu_custom_call.1} parent=1 // pred_region
      %s53 = ssub.s32 2048, 2048
      %54 = vsyncadd [#allocation9], %s53
      %s55 = sshll.u32 [#allocation8], 4
      %s56 = int_to_ptr.vmem [resolvable:$true] %s55
      %61 = dma.hbm_to_vmem [thread:$0]  %s3, 2048, %s56, [#allocation9], 128, 128, 8
    $region17: #{tpu_custom_call.1} parent=1 // pred_fallthru
      _
    // Predicated region
    $region18: #{tpu_custom_call.1} parent=1 // pred_check
      _
    $region19: #{tpu_custom_call.1} parent=1 // pred_check_branch
      %63 = sbr.rel (0) target = $region21
    $region20: #{tpu_custom_call.1} parent=1 // pred_region
      _
    $region21: #{tpu_custom_call.1} parent=1 // pred_fallthru
      _
    // Predicated region
    $region22: #{tpu_custom_call.1} parent=1 // pred_check
      _
    $region23: #{tpu_custom_call.1} parent=1 // pred_check_branch
      %65 = sbr.rel (0) target = $region25
    $region24: #{tpu_custom_call.1} parent=1 // pred_region
      %66 = dma.done [#allocation3], 512
    $region25: #{tpu_custom_call.1} parent=1 // pred_fallthru
      _
    // Predicated region
    $region26: #{tpu_custom_call.1} parent=1 // pred_check
      _
    $region27: #{tpu_custom_call.1} parent=1 // pred_check_branch
      %68 = sbr.rel (0) target = $region29
    $region28: #{tpu_custom_call.1} parent=1 // pred_region
      %69 = dma.done [#allocation6], 256
    $region29: #{tpu_custom_call.1} parent=1 // pred_fallthru
      _
    // Predicated region
    $region30: #{tpu_custom_call.1} parent=1 // pred_check
      _
    $region31: #{tpu_custom_call.1} parent=1 // pred_check_branch
      %71 = sbr.rel (0) target = $region33
    $region32: #{tpu_custom_call.1} parent=1 // pred_region
      %72 = dma.done [#allocation6], 2048
    $region33: #{tpu_custom_call.1} parent=1 // pred_fallthru
      _
    // Predicated region
    $region34: #{tpu_custom_call.1} parent=1 // pred_check
      _
    $region35: #{tpu_custom_call.1} parent=1 // pred_check_branch
      %74 = sbr.rel (0) target = $region37
    $region36: #{tpu_custom_call.1} parent=1 // pred_region
      %75 = dma.done [#allocation9], 2048
    $region37: #{tpu_custom_call.1} parent=1 // pred_fallthru
      _
    %v76 = vld [vmem:[#allocation7] sm:$0xff]
    %v77 = vld [vmem:[#allocation7 + $0x8] sm:$0xff]
    %v78 = vld [vmem:[#allocation7 + $0x10] sm:$0xff]
    %v79 = vld [vmem:[#allocation7 + $0x18] sm:$0xff]
    %v80 = vld [vmem:[#allocation7 + $0x20] sm:$0xff]
    %v81 = vld [vmem:[#allocation7 + $0x28] sm:$0xff]
    %v82 = vld [vmem:[#allocation7 + $0x30] sm:$0xff]
    %v83 = vld [vmem:[#allocation7 + $0x38] sm:$0xff]
    %v84 = vld [vmem:[#allocation7 + $0x40] sm:$0xff]
    %v85 = vld [vmem:[#allocation7 + $0x48] sm:$0xff]
    %v86 = vld [vmem:[#allocation7 + $0x50] sm:$0xff]
    %v87 = vld [vmem:[#allocation7 + $0x58] sm:$0xff]
    %v88 = vld [vmem:[#allocation7 + $0x60] sm:$0xff]
    %v89 = vld [vmem:[#allocation7 + $0x68] sm:$0xff]
    %v90 = vld [vmem:[#allocation7 + $0x70] sm:$0xff]
    %v91 = vld [vmem:[#allocation7 + $0x78] sm:$0xff]
    %v92 = vld [vmem:[#allocation8] sm:$0xff]
    %v93 = vld [vmem:[#allocation8 + $0x8] sm:$0xff]
    %v94 = vld [vmem:[#allocation8 + $0x10] sm:$0xff]
    %v95 = vld [vmem:[#allocation8 + $0x18] sm:$0xff]
    %v96 = vld [vmem:[#allocation8 + $0x20] sm:$0xff]
    %v97 = vld [vmem:[#allocation8 + $0x28] sm:$0xff]
    %v98 = vld [vmem:[#allocation8 + $0x30] sm:$0xff]
    %v99 = vld [vmem:[#allocation8 + $0x38] sm:$0xff]
    %v100 = vld [vmem:[#allocation8 + $0x40] sm:$0xff]
    %v101 = vld [vmem:[#allocation8 + $0x48] sm:$0xff]
    %v102 = vld [vmem:[#allocation8 + $0x50] sm:$0xff]
    %v103 = vld [vmem:[#allocation8 + $0x58] sm:$0xff]
    %v104 = vld [vmem:[#allocation8 + $0x60] sm:$0xff]
    %v105 = vld [vmem:[#allocation8 + $0x68] sm:$0xff]
    %v106 = vld [vmem:[#allocation8 + $0x70] sm:$0xff]
    %v107 = vld [vmem:[#allocation8 + $0x78] sm:$0xff]
    %v108 = vld [vmem:[%s4] sm:$0x1]
    %v109 = vld [vmem:[#allocation2] sm:$0xff]
    %v110 = vld [vmem:[#allocation2 + $0x8] sm:$0xff]
    %v111 = vld [vmem:[#allocation2 + $0x10] sm:$0xff]
    %v112 = vld [vmem:[#allocation2 + $0x18] sm:$0xff]
    %v113 = vld [vmem:[#allocation5] sm:$0xff]
    %v114 = vld [vmem:[#allocation5 + $0x8] sm:$0xff]
    %vm115 = vcmask 261120
    %v117 = vsel %vm115, %v109, 0
    %v120 = vsel %vm115, %v110, 0
    %v123 = vsel %vm115, %v111, 0
    %v126 = vsel %vm115, %v112, 0
    %128 = vmatprep.subr.mxu0 0.0
    %129 = vmatpush1.msra.mxu0 0.0
    %130 = vmatprep.subr.mxu0 0.0
    %131 = vmatpush1.msra.mxu0 0.0
    %132 = vmatprep.subr.mxu0 0.0
    %133 = vmatpush1.msra.mxu0 0.0
    %134 = vmatprep.subr.mxu0 0.0
    %135 = vmatpush1.msra.mxu0 0.0
    %136 = vmatprep.subr.mxu0 0.0
    %137 = vmatpush1.msra.mxu0 0.0
    %138 = vmatprep.subr.mxu0 0.0
    %139 = vmatpush1.msra.mxu0 0.0
    %140 = vmatprep.subr.mxu0 0.0
    %141 = vmatpush1.msra.mxu0 0.0
    %142 = vmatprep.subr.mxu0 0.0
    %143 = vmatpush1.msra.mxu0 0.0
    %144 = vmatprep.subr.mxu0 0.0
    %145 = vmatpush1.msra.mxu0 0.0
    %146 = vmatprep.subr.mxu0 0.0
    %147 = vmatpush1.msra.mxu0 0.0
    %148 = vmatprep.subr.mxu0 0.0
    %149 = vmatpush1.msra.mxu0 0.0
    %150 = vmatprep.subr.mxu0 0.0
    %151 = vmatpush1.msra.mxu0 0.0
    %152 = vmatprep.subr.mxu0 0.0
    %153 = vmatpush1.msra.mxu0 %v79
    %154 = vmatprep.subr.mxu0 0.0
    %155 = vmatpush1.msra.mxu0 %v78
    %156 = vmatprep.subr.mxu0 0.0
    %157 = vmatpush1.msra.mxu0 %v77
    %158 = vmatprep.subr.mxu0 0.0
    %159 = vmatpush1.msra.mxu0 %v76
    %160 = vmatprep.subr.mxu0 0.0
    %161 = vmatpush2.msra.mxu0 0.0
    %162 = vmatprep.subr.mxu0 0.0
    %163 = vmatpush2.msra.mxu0 0.0
    %164 = vmatprep.subr.mxu0 0.0
    %165 = vmatpush2.msra.mxu0 0.0
    %166 = vmatprep.subr.mxu0 0.0
    %167 = vmatpush2.msra.mxu0 0.0
    %168 = vmatprep.subr.mxu0 0.0
    %169 = vmatpush2.msra.mxu0 0.0
    %170 = vmatprep.subr.mxu0 0.0
    %171 = vmatpush2.msra.mxu0 0.0
    %172 = vmatprep.subr.mxu0 0.0
    %173 = vmatpush2.msra.mxu0 0.0
    %174 = vmatprep.subr.mxu0 0.0
    %175 = vmatpush2.msra.mxu0 0.0
    %176 = vmatprep.subr.mxu0 0.0
    %177 = vmatpush2.msra.mxu0 0.0
    %178 = vmatprep.subr.mxu0 0.0
    %179 = vmatpush2.msra.mxu0 0.0
    %180 = vmatprep.subr.mxu0 0.0
    %181 = vmatpush2.msra.mxu0 0.0
    %182 = vmatprep.subr.mxu0 0.0
    %183 = vmatpush2.msra.mxu0 0.0
    %184 = vmatprep.subr.mxu0 0.0
    %185 = vmatpush2.msra.mxu0 0.0
    %186 = vmatprep.subr.mxu0 0.0
    %187 = vmatpush2.msra.mxu0 0.0
    %188 = vmatprep.subr.mxu0 0.0
    %189 = vmatpush2.msra.mxu0 0.0
    %190 = vmatprep.subr.mxu0 0.0
    %191 = vmatpush2.msra.mxu0 0.0
    %192 = vmatprep.mubr.f32.mxu0 0.0
    %193 = vmatmul.mubr.f32.gmra.mxu0 %v117
    %v194 = vpop.f32.mrf.mxu0
    %v195 = vadd.f32 0.0, %v194
    %v196 = vpop.f32.mrf.mxu0
    %197 = vmatprep.mubr.f32.mxu0 0.0
    %198 = vmatmul.mubr.f32.gmra.mxu0 %v120
    %v199 = vpop.f32.mrf.mxu0
    %v200 = vadd.f32 0.0, %v199
    %v201 = vpop.f32.mrf.mxu0
    %202 = vmatprep.mubr.f32.mxu0 0.0
    %203 = vmatmul.mubr.f32.gmra.mxu0 %v123
    %v204 = vpop.f32.mrf.mxu0
    %v205 = vadd.f32 0.0, %v204
    %v206 = vpop.f32.mrf.mxu0
    %207 = vmatprep.mubr.f32.mxu0 0.0
    %208 = vmatmul.mubr.f32.gmra.mxu0 %v126
    %v209 = vpop.f32.mrf.mxu0
    %v210 = vadd.f32 0.0, %v209
    %v211 = vpop.f32.mrf.mxu0
    %212 = vdwg.mxu0
    %213 = vmatprep.subr.mxu0 0.0
    %214 = vmatpush1.msra.mxu0 0.0
    %215 = vmatprep.subr.mxu0 0.0
    %216 = vmatpush1.msra.mxu0 0.0
    %217 = vmatprep.subr.mxu0 0.0
    %218 = vmatpush1.msra.mxu0 0.0
    %219 = vmatprep.subr.mxu0 0.0
    %220 = vmatpush1.msra.mxu0 0.0
    %221 = vmatprep.subr.mxu0 0.0
    %222 = vmatpush1.msra.mxu0 0.0
    %223 = vmatprep.subr.mxu0 0.0
    %224 = vmatpush1.msra.mxu0 0.0
    %225 = vmatprep.subr.mxu0 0.0
    %226 = vmatpush1.msra.mxu0 0.0
    %227 = vmatprep.subr.mxu0 0.0
    %228 = vmatpush1.msra.mxu0 0.0
    %229 = vmatprep.subr.mxu0 0.0
    %230 = vmatpush1.msra.mxu0 0.0
    %231 = vmatprep.subr.mxu0 0.0
    %232 = vmatpush1.msra.mxu0 0.0
    %233 = vmatprep.subr.mxu0 0.0
    %234 = vmatpush1.msra.mxu0 0.0
    %235 = vmatprep.subr.mxu0 0.0
    %236 = vmatpush1.msra.mxu0 0.0
    %237 = vmatprep.subr.mxu0 0.0
    %238 = vmatpush1.msra.mxu0 %v83
    %239 = vmatprep.subr.mxu0 0.0
    %240 = vmatpush1.msra.mxu0 %v82
    %241 = vmatprep.subr.mxu0 0.0
    %242 = vmatpush1.msra.mxu0 %v81
    %243 = vmatprep.subr.mxu0 0.0
    %244 = vmatpush1.msra.mxu0 %v80
    %245 = vmatprep.subr.mxu0 0.0
    %246 = vmatpush2.msra.mxu0 0.0
    %247 = vmatprep.subr.mxu0 0.0
    %248 = vmatpush2.msra.mxu0 0.0
    %249 = vmatprep.subr.mxu0 0.0
    %250 = vmatpush2.msra.mxu0 0.0
    %251 = vmatprep.subr.mxu0 0.0
    %252 = vmatpush2.msra.mxu0 0.0
    %253 = vmatprep.subr.mxu0 0.0
    %254 = vmatpush2.msra.mxu0 0.0
    %255 = vmatprep.subr.mxu0 0.0
    %256 = vmatpush2.msra.mxu0 0.0
    %257 = vmatprep.subr.mxu0 0.0
    %258 = vmatpush2.msra.mxu0 0.0
    %259 = vmatprep.subr.mxu0 0.0
    %260 = vmatpush2.msra.mxu0 0.0
    %261 = vmatprep.subr.mxu0 0.0
    %262 = vmatpush2.msra.mxu0 0.0
    %263 = vmatprep.subr.mxu0 0.0
    %264 = vmatpush2.msra.mxu0 0.0
    %265 = vmatprep.subr.mxu0 0.0
    %266 = vmatpush2.msra.mxu0 0.0
    %267 = vmatprep.subr.mxu0 0.0
    %268 = vmatpush2.msra.mxu0 0.0
    %269 = vmatprep.subr.mxu0 0.0
    %270 = vmatpush2.msra.mxu0 0.0
    %271 = vmatprep.subr.mxu0 0.0
    %272 = vmatpush2.msra.mxu0 0.0
    %273 = vmatprep.subr.mxu0 0.0
    %274 = vmatpush2.msra.mxu0 0.0
    %275 = vmatprep.subr.mxu0 0.0
    %276 = vmatpush2.msra.mxu0 0.0
    %277 = vmatprep.mubr.f32.mxu0 0.0
    %278 = vmatmul.mubr.f32.gmra.mxu0 %v117
    %v279 = vpop.f32.mrf.mxu0
    %v280 = vadd.f32 0.0, %v279
    %v281 = vpop.f32.mrf.mxu0
    %282 = vmatprep.mubr.f32.mxu0 0.0
    %283 = vmatmul.mubr.f32.gmra.mxu0 %v120
    %v284 = vpop.f32.mrf.mxu0
    %v285 = vadd.f32 0.0, %v284
    %v286 = vpop.f32.mrf.mxu0
    %287 = vmatprep.mubr.f32.mxu0 0.0
    %288 = vmatmul.mubr.f32.gmra.mxu0 %v123
    %v289 = vpop.f32.mrf.mxu0
    %v290 = vadd.f32 0.0, %v289
    %v291 = vpop.f32.mrf.mxu0
    %292 = vmatprep.mubr.f32.mxu0 0.0
    %293 = vmatmul.mubr.f32.gmra.mxu0 %v126
    %v294 = vpop.f32.mrf.mxu0
    %v295 = vadd.f32 0.0, %v294
    %v296 = vpop.f32.mrf.mxu0
    %297 = vdwg.mxu0
    %298 = vmatprep.subr.mxu0 0.0
    %299 = vmatpush1.msra.mxu0 0.0
    %300 = vmatprep.subr.mxu0 0.0
    %301 = vmatpush1.msra.mxu0 0.0
    %302 = vmatprep.subr.mxu0 0.0
    %303 = vmatpush1.msra.mxu0 0.0
    %304 = vmatprep.subr.mxu0 0.0
    %305 = vmatpush1.msra.mxu0 0.0
    %306 = vmatprep.subr.mxu0 0.0
    %307 = vmatpush1.msra.mxu0 0.0
    %308 = vmatprep.subr.mxu0 0.0
    %309 = vmatpush1.msra.mxu0 0.0
    %310 = vmatprep.subr.mxu0 0.0
    %311 = vmatpush1.msra.mxu0 0.0
    %312 = vmatprep.subr.mxu0 0.0
    %313 = vmatpush1.msra.mxu0 0.0
    %314 = vmatprep.subr.mxu0 0.0
    %315 = vmatpush1.msra.mxu0 0.0
    %316 = vmatprep.subr.mxu0 0.0
    %317 = vmatpush1.msra.mxu0 0.0
    %318 = vmatprep.subr.mxu0 0.0
    %319 = vmatpush1.msra.mxu0 0.0
    %320 = vmatprep.subr.mxu0 0.0
    %321 = vmatpush1.msra.mxu0 0.0
    %322 = vmatprep.subr.mxu0 0.0
    %323 = vmatpush1.msra.mxu0 %v87
    %324 = vmatprep.subr.mxu0 0.0
    %325 = vmatpush1.msra.mxu0 %v86
    %326 = vmatprep.subr.mxu0 0.0
    %327 = vmatpush1.msra.mxu0 %v85
    %328 = vmatprep.subr.mxu0 0.0
    %329 = vmatpush1.msra.mxu0 %v84
    %330 = vmatprep.subr.mxu0 0.0
    %331 = vmatpush2.msra.mxu0 0.0
    %332 = vmatprep.subr.mxu0 0.0
    %333 = vmatpush2.msra.mxu0 0.0
    %334 = vmatprep.subr.mxu0 0.0
    %335 = vmatpush2.msra.mxu0 0.0
    %336 = vmatprep.subr.mxu0 0.0
    %337 = vmatpush2.msra.mxu0 0.0
    %338 = vmatprep.subr.mxu0 0.0
    %339 = vmatpush2.msra.mxu0 0.0
    %340 = vmatprep.subr.mxu0 0.0
    %341 = vmatpush2.msra.mxu0 0.0
    %342 = vmatprep.subr.mxu0 0.0
    %343 = vmatpush2.msra.mxu0 0.0
    %344 = vmatprep.subr.mxu0 0.0
    %345 = vmatpush2.msra.mxu0 0.0
    %346 = vmatprep.subr.mxu0 0.0
    %347 = vmatpush2.msra.mxu0 0.0
    %348 = vmatprep.subr.mxu0 0.0
    %349 = vmatpush2.msra.mxu0 0.0
    %350 = vmatprep.subr.mxu0 0.0
    %351 = vmatpush2.msra.mxu0 0.0
    %352 = vmatprep.subr.mxu0 0.0
    %353 = vmatpush2.msra.mxu0 0.0
    %354 = vmatprep.subr.mxu0 0.0
    %355 = vmatpush2.msra.mxu0 0.0
    %356 = vmatprep.subr.mxu0 0.0
    %357 = vmatpush2.msra.mxu0 0.0
    %358 = vmatprep.subr.mxu0 0.0
    %359 = vmatpush2.msra.mxu0 0.0
    %360 = vmatprep.subr.mxu0 0.0
    %361 = vmatpush2.msra.mxu0 0.0
    %362 = vmatprep.mubr.f32.mxu0 0.0
    %363 = vmatmul.mubr.f32.gmra.mxu0 %v117
    %v364 = vpop.f32.mrf.mxu0
    %v365 = vadd.f32 0.0, %v364
    %v366 = vpop.f32.mrf.mxu0
    %367 = vmatprep.mubr.f32.mxu0 0.0
    %368 = vmatmul.mubr.f32.gmra.mxu0 %v120
    %v369 = vpop.f32.mrf.mxu0
    %v370 = vadd.f32 0.0, %v369
    %v371 = vpop.f32.mrf.mxu0
    %372 = vmatprep.mubr.f32.mxu0 0.0
    %373 = vmatmul.mubr.f32.gmra.mxu0 %v123
    %v374 = vpop.f32.mrf.mxu0
    %v375 = vadd.f32 0.0, %v374
    %v376 = vpop.f32.mrf.mxu0
    %377 = vmatprep.mubr.f32.mxu0 0.0
    %378 = vmatmul.mubr.f32.gmra.mxu0 %v126
    %v379 = vpop.f32.mrf.mxu0
    %v380 = vadd.f32 0.0, %v379
    %v381 = vpop.f32.mrf.mxu0
    %382 = vdwg.mxu0
    %383 = vmatprep.subr.mxu0 0.0
    %384 = vmatpush1.msra.mxu0 0.0
    %385 = vmatprep.subr.mxu0 0.0
    %386 = vmatpush1.msra.mxu0 0.0
    %387 = vmatprep.subr.mxu0 0.0
    %388 = vmatpush1.msra.mxu0 0.0
    %389 = vmatprep.subr.mxu0 0.0
    %390 = vmatpush1.msra.mxu0 0.0
    %391 = vmatprep.subr.mxu0 0.0
    %392 = vmatpush1.msra.mxu0 0.0
    %393 = vmatprep.subr.mxu0 0.0
    %394 = vmatpush1.msra.mxu0 0.0
    %395 = vmatprep.subr.mxu0 0.0
    %396 = vmatpush1.msra.mxu0 0.0
    %397 = vmatprep.subr.mxu0 0.0
    %398 = vmatpush1.msra.mxu0 0.0
    %399 = vmatprep.subr.mxu0 0.0
    %400 = vmatpush1.msra.mxu0 0.0
    %401 = vmatprep.subr.mxu0 0.0
    %402 = vmatpush1.msra.mxu0 0.0
    %403 = vmatprep.subr.mxu0 0.0
    %404 = vmatpush1.msra.mxu0 0.0
    %405 = vmatprep.subr.mxu0 0.0
    %406 = vmatpush1.msra.mxu0 0.0
    %407 = vmatprep.subr.mxu0 0.0
    %408 = vmatpush1.msra.mxu0 %v91
    %409 = vmatprep.subr.mxu0 0.0
    %410 = vmatpush1.msra.mxu0 %v90
    %411 = vmatprep.subr.mxu0 0.0
    %412 = vmatpush1.msra.mxu0 %v89
    %413 = vmatprep.subr.mxu0 0.0
    %414 = vmatpush1.msra.mxu0 %v88
    %415 = vmatprep.subr.mxu0 0.0
    %416 = vmatpush2.msra.mxu0 0.0
    %417 = vmatprep.subr.mxu0 0.0
    %418 = vmatpush2.msra.mxu0 0.0
    %419 = vmatprep.subr.mxu0 0.0
    %420 = vmatpush2.msra.mxu0 0.0
    %421 = vmatprep.subr.mxu0 0.0
    %422 = vmatpush2.msra.mxu0 0.0
    %423 = vmatprep.subr.mxu0 0.0
    %424 = vmatpush2.msra.mxu0 0.0
    %425 = vmatprep.subr.mxu0 0.0
    %426 = vmatpush2.msra.mxu0 0.0
    %427 = vmatprep.subr.mxu0 0.0
    %428 = vmatpush2.msra.mxu0 0.0
    %429 = vmatprep.subr.mxu0 0.0
    %430 = vmatpush2.msra.mxu0 0.0
    %431 = vmatprep.subr.mxu0 0.0
    %432 = vmatpush2.msra.mxu0 0.0
    %433 = vmatprep.subr.mxu0 0.0
    %434 = vmatpush2.msra.mxu0 0.0
    %435 = vmatprep.subr.mxu0 0.0
    %436 = vmatpush2.msra.mxu0 0.0
    %437 = vmatprep.subr.mxu0 0.0
    %438 = vmatpush2.msra.mxu0 0.0
    %439 = vmatprep.subr.mxu0 0.0
    %440 = vmatpush2.msra.mxu0 0.0
    %441 = vmatprep.subr.mxu0 0.0
    %442 = vmatpush2.msra.mxu0 0.0
    %443 = vmatprep.subr.mxu0 0.0
    %444 = vmatpush2.msra.mxu0 0.0
    %445 = vmatprep.subr.mxu0 0.0
    %446 = vmatpush2.msra.mxu0 0.0
    %447 = vmatprep.mubr.f32.mxu0 0.0
    %448 = vmatmul.mubr.f32.gmra.mxu0 %v117
    %v449 = vpop.f32.mrf.mxu0
    %v450 = vadd.f32 0.0, %v449
    %v451 = vpop.f32.mrf.mxu0
    %452 = vmatprep.mubr.f32.mxu0 0.0
    %453 = vmatmul.mubr.f32.gmra.mxu0 %v120
    %v454 = vpop.f32.mrf.mxu0
    %v455 = vadd.f32 0.0, %v454
    %v456 = vpop.f32.mrf.mxu0
    %457 = vmatprep.mubr.f32.mxu0 0.0
    %458 = vmatmul.mubr.f32.gmra.mxu0 %v123
    %v459 = vpop.f32.mrf.mxu0
    %v460 = vadd.f32 0.0, %v459
    %v461 = vpop.f32.mrf.mxu0
    %462 = vmatprep.mubr.f32.mxu0 0.0
    %463 = vmatmul.mubr.f32.gmra.mxu0 %v126
    %v464 = vpop.f32.mrf.mxu0
    %v465 = vadd.f32 0.0, %v464
    %v466 = vpop.f32.mrf.mxu0
    %467 = vdwg.mxu0
    %v469 = vsel %vm115, %v113, 0
    %v472 = vsel %vm115, %v114, 0
    %474 = vmatprep.subr.mxu0 0.0
    %475 = vmatpush1.msra.mxu0 0.0
    %476 = vmatprep.subr.mxu0 0.0
    %477 = vmatpush1.msra.mxu0 0.0
    %478 = vmatprep.subr.mxu0 0.0
    %479 = vmatpush1.msra.mxu0 0.0
    %480 = vmatprep.subr.mxu0 0.0
    %481 = vmatpush1.msra.mxu0 0.0
    %482 = vmatprep.subr.mxu0 0.0
    %483 = vmatpush1.msra.mxu0 0.0
    %484 = vmatprep.subr.mxu0 0.0
    %485 = vmatpush1.msra.mxu0 0.0
    %486 = vmatprep.subr.mxu0 0.0
    %487 = vmatpush1.msra.mxu0 0.0
    %488 = vmatprep.subr.mxu0 0.0
    %489 = vmatpush1.msra.mxu0 0.0
    %490 = vmatprep.subr.mxu0 0.0
    %491 = vmatpush1.msra.mxu0 0.0
    %492 = vmatprep.subr.mxu0 0.0
    %493 = vmatpush1.msra.mxu0 0.0
    %494 = vmatprep.subr.mxu0 0.0
    %495 = vmatpush1.msra.mxu0 0.0
    %496 = vmatprep.subr.mxu0 0.0
    %497 = vmatpush1.msra.mxu0 0.0
    %498 = vmatprep.subr.mxu0 0.0
    %499 = vmatpush1.msra.mxu0 %v95
    %500 = vmatprep.subr.mxu0 0.0
    %501 = vmatpush1.msra.mxu0 %v94
    %502 = vmatprep.subr.mxu0 0.0
    %503 = vmatpush1.msra.mxu0 %v93
    %504 = vmatprep.subr.mxu0 0.0
    %505 = vmatpush1.msra.mxu0 %v92
    %506 = vmatprep.subr.mxu0 0.0
    %507 = vmatpush2.msra.mxu0 0.0
    %508 = vmatprep.subr.mxu0 0.0
    %509 = vmatpush2.msra.mxu0 0.0
    %510 = vmatprep.subr.mxu0 0.0
    %511 = vmatpush2.msra.mxu0 0.0
    %512 = vmatprep.subr.mxu0 0.0
    %513 = vmatpush2.msra.mxu0 0.0
    %514 = vmatprep.subr.mxu0 0.0
    %515 = vmatpush2.msra.mxu0 0.0
    %516 = vmatprep.subr.mxu0 0.0
    %517 = vmatpush2.msra.mxu0 0.0
    %518 = vmatprep.subr.mxu0 0.0
    %519 = vmatpush2.msra.mxu0 0.0
    %520 = vmatprep.subr.mxu0 0.0
    %521 = vmatpush2.msra.mxu0 0.0
    %522 = vmatprep.subr.mxu0 0.0
    %523 = vmatpush2.msra.mxu0 0.0
    %524 = vmatprep.subr.mxu0 0.0
    %525 = vmatpush2.msra.mxu0 0.0
    %526 = vmatprep.subr.mxu0 0.0
    %527 = vmatpush2.msra.mxu0 0.0
    %528 = vmatprep.subr.mxu0 0.0
    %529 = vmatpush2.msra.mxu0 0.0
    %530 = vmatprep.subr.mxu0 0.0
    %531 = vmatpush2.msra.mxu0 0.0
    %532 = vmatprep.subr.mxu0 0.0
    %533 = vmatpush2.msra.mxu0 0.0
    %534 = vmatprep.subr.mxu0 0.0
    %535 = vmatpush2.msra.mxu0 0.0
    %536 = vmatprep.subr.mxu0 0.0
    %537 = vmatpush2.msra.mxu0 0.0
    %538 = vmatprep.mubr.f32.mxu0 0.0
    %539 = vmatmul.mubr.f32.gmra.mxu0 %v469
    %v540 = vpop.f32.mrf.mxu0
    %v541 = vadd.f32 0.0, %v540
    %v542 = vpop.f32.mrf.mxu0
    %543 = vmatprep.mubr.f32.mxu0 0.0
    %544 = vmatmul.mubr.f32.gmra.mxu0 %v472
    %v545 = vpop.f32.mrf.mxu0
    %v546 = vadd.f32 0.0, %v545
    %v547 = vpop.f32.mrf.mxu0
    %548 = vdwg.mxu0
    %549 = vmatprep.subr.mxu0 0.0
    %550 = vmatpush1.msra.mxu0 0.0
    %551 = vmatprep.subr.mxu0 0.0
    %552 = vmatpush1.msra.mxu0 0.0
    %553 = vmatprep.subr.mxu0 0.0
    %554 = vmatpush1.msra.mxu0 0.0
    %555 = vmatprep.subr.mxu0 0.0
    %556 = vmatpush1.msra.mxu0 0.0
    %557 = vmatprep.subr.mxu0 0.0
    %558 = vmatpush1.msra.mxu0 0.0
    %559 = vmatprep.subr.mxu0 0.0
    %560 = vmatpush1.msra.mxu0 0.0
    %561 = vmatprep.subr.mxu0 0.0
    %562 = vmatpush1.msra.mxu0 0.0
    %563 = vmatprep.subr.mxu0 0.0
    %564 = vmatpush1.msra.mxu0 0.0
    %565 = vmatprep.subr.mxu0 0.0
    %566 = vmatpush1.msra.mxu0 0.0
    %567 = vmatprep.subr.mxu0 0.0
    %568 = vmatpush1.msra.mxu0 0.0
    %569 = vmatprep.subr.mxu0 0.0
    %570 = vmatpush1.msra.mxu0 0.0
    %571 = vmatprep.subr.mxu0 0.0
    %572 = vmatpush1.msra.mxu0 0.0
    %573 = vmatprep.subr.mxu0 0.0
    %574 = vmatpush1.msra.mxu0 %v99
    %575 = vmatprep.subr.mxu0 0.0
    %576 = vmatpush1.msra.mxu0 %v98
    %577 = vmatprep.subr.mxu0 0.0
    %578 = vmatpush1.msra.mxu0 %v97
    %579 = vmatprep.subr.mxu0 0.0
    %580 = vmatpush1.msra.mxu0 %v96
    %581 = vmatprep.subr.mxu0 0.0
    %582 = vmatpush2.msra.mxu0 0.0
    %583 = vmatprep.subr.mxu0 0.0
    %584 = vmatpush2.msra.mxu0 0.0
    %585 = vmatprep.subr.mxu0 0.0
    %586 = vmatpush2.msra.mxu0 0.0
    %587 = vmatprep.subr.mxu0 0.0
    %588 = vmatpush2.msra.mxu0 0.0
    %589 = vmatprep.subr.mxu0 0.0
    %590 = vmatpush2.msra.mxu0 0.0
    %591 = vmatprep.subr.mxu0 0.0
    %592 = vmatpush2.msra.mxu0 0.0
    %593 = vmatprep.subr.mxu0 0.0
    %594 = vmatpush2.msra.mxu0 0.0
    %595 = vmatprep.subr.mxu0 0.0
    %596 = vmatpush2.msra.mxu0 0.0
    %597 = vmatprep.subr.mxu0 0.0
    %598 = vmatpush2.msra.mxu0 0.0
    %599 = vmatprep.subr.mxu0 0.0
    %600 = vmatpush2.msra.mxu0 0.0
    %601 = vmatprep.subr.mxu0 0.0
    %602 = vmatpush2.msra.mxu0 0.0
    %603 = vmatprep.subr.mxu0 0.0
    %604 = vmatpush2.msra.mxu0 0.0
    %605 = vmatprep.subr.mxu0 0.0
    %606 = vmatpush2.msra.mxu0 0.0
    %607 = vmatprep.subr.mxu0 0.0
    %608 = vmatpush2.msra.mxu0 0.0
    %609 = vmatprep.subr.mxu0 0.0
    %610 = vmatpush2.msra.mxu0 0.0
    %611 = vmatprep.subr.mxu0 0.0
    %612 = vmatpush2.msra.mxu0 0.0
    %613 = vmatprep.mubr.f32.mxu0 0.0
    %614 = vmatmul.mubr.f32.gmra.mxu0 %v469
    %v615 = vpop.f32.mrf.mxu0
    %v616 = vadd.f32 0.0, %v615
    %v617 = vpop.f32.mrf.mxu0
    %618 = vmatprep.mubr.f32.mxu0 0.0
    %619 = vmatmul.mubr.f32.gmra.mxu0 %v472
    %v620 = vpop.f32.mrf.mxu0
    %v621 = vadd.f32 0.0, %v620
    %v622 = vpop.f32.mrf.mxu0
    %623 = vdwg.mxu0
    %624 = vmatprep.subr.mxu0 0.0
    %625 = vmatpush1.msra.mxu0 0.0
    %626 = vmatprep.subr.mxu0 0.0
    %627 = vmatpush1.msra.mxu0 0.0
    %628 = vmatprep.subr.mxu0 0.0
    %629 = vmatpush1.msra.mxu0 0.0
    %630 = vmatprep.subr.mxu0 0.0
    %631 = vmatpush1.msra.mxu0 0.0
    %632 = vmatprep.subr.mxu0 0.0
    %633 = vmatpush1.msra.mxu0 0.0
    %634 = vmatprep.subr.mxu0 0.0
    %635 = vmatpush1.msra.mxu0 0.0
    %636 = vmatprep.subr.mxu0 0.0
    %637 = vmatpush1.msra.mxu0 0.0
    %638 = vmatprep.subr.mxu0 0.0
    %639 = vmatpush1.msra.mxu0 0.0
    %640 = vmatprep.subr.mxu0 0.0
    %641 = vmatpush1.msra.mxu0 0.0
    %642 = vmatprep.subr.mxu0 0.0
    %643 = vmatpush1.msra.mxu0 0.0
    %644 = vmatprep.subr.mxu0 0.0
    %645 = vmatpush1.msra.mxu0 0.0
    %646 = vmatprep.subr.mxu0 0.0
    %647 = vmatpush1.msra.mxu0 0.0
    %648 = vmatprep.subr.mxu0 0.0
    %649 = vmatpush1.msra.mxu0 %v103
    %650 = vmatprep.subr.mxu0 0.0
    %651 = vmatpush1.msra.mxu0 %v102
    %652 = vmatprep.subr.mxu0 0.0
    %653 = vmatpush1.msra.mxu0 %v101
    %654 = vmatprep.subr.mxu0 0.0
    %655 = vmatpush1.msra.mxu0 %v100
    %656 = vmatprep.subr.mxu0 0.0
    %657 = vmatpush2.msra.mxu0 0.0
    %658 = vmatprep.subr.mxu0 0.0
    %659 = vmatpush2.msra.mxu0 0.0
    %660 = vmatprep.subr.mxu0 0.0
    %661 = vmatpush2.msra.mxu0 0.0
    %662 = vmatprep.subr.mxu0 0.0
    %663 = vmatpush2.msra.mxu0 0.0
    %664 = vmatprep.subr.mxu0 0.0
    %665 = vmatpush2.msra.mxu0 0.0
    %666 = vmatprep.subr.mxu0 0.0
    %667 = vmatpush2.msra.mxu0 0.0
    %668 = vmatprep.subr.mxu0 0.0
    %669 = vmatpush2.msra.mxu0 0.0
    %670 = vmatprep.subr.mxu0 0.0
    %671 = vmatpush2.msra.mxu0 0.0
    %672 = vmatprep.subr.mxu0 0.0
    %673 = vmatpush2.msra.mxu0 0.0
    %674 = vmatprep.subr.mxu0 0.0
    %675 = vmatpush2.msra.mxu0 0.0
    %676 = vmatprep.subr.mxu0 0.0
    %677 = vmatpush2.msra.mxu0 0.0
    %678 = vmatprep.subr.mxu0 0.0
    %679 = vmatpush2.msra.mxu0 0.0
    %680 = vmatprep.subr.mxu0 0.0
    %681 = vmatpush2.msra.mxu0 0.0
    %682 = vmatprep.subr.mxu0 0.0
    %683 = vmatpush2.msra.mxu0 0.0
    %684 = vmatprep.subr.mxu0 0.0
    %685 = vmatpush2.msra.mxu0 0.0
    %686 = vmatprep.subr.mxu0 0.0
    %687 = vmatpush2.msra.mxu0 0.0
    %688 = vmatprep.mubr.f32.mxu0 0.0
    %689 = vmatmul.mubr.f32.gmra.mxu0 %v469
    %v690 = vpop.f32.mrf.mxu0
    %v691 = vadd.f32 0.0, %v690
    %v692 = vpop.f32.mrf.mxu0
    %693 = vmatprep.mubr.f32.mxu0 0.0
    %694 = vmatmul.mubr.f32.gmra.mxu0 %v472
    %v695 = vpop.f32.mrf.mxu0
    %v696 = vadd.f32 0.0, %v695
    %v697 = vpop.f32.mrf.mxu0
    %698 = vdwg.mxu0
    %699 = vmatprep.subr.mxu0 0.0
    %700 = vmatpush1.msra.mxu0 0.0
    %701 = vmatprep.subr.mxu0 0.0
    %702 = vmatpush1.msra.mxu0 0.0
    %703 = vmatprep.subr.mxu0 0.0
    %704 = vmatpush1.msra.mxu0 0.0
    %705 = vmatprep.subr.mxu0 0.0
    %706 = vmatpush1.msra.mxu0 0.0
    %707 = vmatprep.subr.mxu0 0.0
    %708 = vmatpush1.msra.mxu0 0.0
    %709 = vmatprep.subr.mxu0 0.0
    %710 = vmatpush1.msra.mxu0 0.0
    %711 = vmatprep.subr.mxu0 0.0
    %712 = vmatpush1.msra.mxu0 0.0
    %713 = vmatprep.subr.mxu0 0.0
    %714 = vmatpush1.msra.mxu0 0.0
    %715 = vmatprep.subr.mxu0 0.0
    %716 = vmatpush1.msra.mxu0 0.0
    %717 = vmatprep.subr.mxu0 0.0
    %718 = vmatpush1.msra.mxu0 0.0
    %719 = vmatprep.subr.mxu0 0.0
    %720 = vmatpush1.msra.mxu0 0.0
    %721 = vmatprep.subr.mxu0 0.0
    %722 = vmatpush1.msra.mxu0 0.0
    %723 = vmatprep.subr.mxu0 0.0
    %724 = vmatpush1.msra.mxu0 %v107
    %725 = vmatprep.subr.mxu0 0.0
    %726 = vmatpush1.msra.mxu0 %v106
    %727 = vmatprep.subr.mxu0 0.0
    %728 = vmatpush1.msra.mxu0 %v105
    %729 = vmatprep.subr.mxu0 0.0
    %730 = vmatpush1.msra.mxu0 %v104
    %731 = vmatprep.subr.mxu0 0.0
    %732 = vmatpush2.msra.mxu0 0.0
    %733 = vmatprep.subr.mxu0 0.0
    %734 = vmatpush2.msra.mxu0 0.0
    %735 = vmatprep.subr.mxu0 0.0
    %736 = vmatpush2.msra.mxu0 0.0
    %737 = vmatprep.subr.mxu0 0.0
    %738 = vmatpush2.msra.mxu0 0.0
    %739 = vmatprep.subr.mxu0 0.0
    %740 = vmatpush2.msra.mxu0 0.0
    %741 = vmatprep.subr.mxu0 0.0
    %742 = vmatpush2.msra.mxu0 0.0
    %743 = vmatprep.subr.mxu0 0.0
    %744 = vmatpush2.msra.mxu0 0.0
    %745 = vmatprep.subr.mxu0 0.0
    %746 = vmatpush2.msra.mxu0 0.0
    %747 = vmatprep.subr.mxu0 0.0
    %748 = vmatpush2.msra.mxu0 0.0
    %749 = vmatprep.subr.mxu0 0.0
    %750 = vmatpush2.msra.mxu0 0.0
    %751 = vmatprep.subr.mxu0 0.0
    %752 = vmatpush2.msra.mxu0 0.0
    %753 = vmatprep.subr.mxu0 0.0
    %754 = vmatpush2.msra.mxu0 0.0
    %755 = vmatprep.subr.mxu0 0.0
    %756 = vmatpush2.msra.mxu0 0.0
    %757 = vmatprep.subr.mxu0 0.0
    %758 = vmatpush2.msra.mxu0 0.0
    %759 = vmatprep.subr.mxu0 0.0
    %760 = vmatpush2.msra.mxu0 0.0
    %761 = vmatprep.subr.mxu0 0.0
    %762 = vmatpush2.msra.mxu0 0.0
    %763 = vmatprep.mubr.f32.mxu0 0.0
    %764 = vmatmul.mubr.f32.gmra.mxu0 %v469
    %v765 = vpop.f32.mrf.mxu0
    %v766 = vadd.f32 0.0, %v765
    %v767 = vpop.f32.mrf.mxu0
    %768 = vmatprep.mubr.f32.mxu0 0.0
    %769 = vmatmul.mubr.f32.gmra.mxu0 %v472
    %v770 = vpop.f32.mrf.mxu0
    %v771 = vadd.f32 0.0, %v770
    %v772 = vpop.f32.mrf.mxu0
    %773 = vdwg.mxu0
    %v775 = vsel %vm115, %v195, 0
    %v778 = vsel %vm115, %v200, 0
    %780 = vmatprep.subr.mxu0 0.0
    %781 = vmatpush1.xpose.msra.mxu0 0.0
    %782 = vmatprep.subr.mxu0 0.0
    %783 = vmatpush1.xpose.msra.mxu0 0.0
    %784 = vmatprep.subr.mxu0 0.0
    %785 = vmatpush1.xpose.msra.mxu0 0.0
    %786 = vmatprep.subr.mxu0 0.0
    %787 = vmatpush1.xpose.msra.mxu0 0.0
    %788 = vmatprep.subr.mxu0 0.0
    %789 = vmatpush1.xpose.msra.mxu0 0.0
    %790 = vmatprep.subr.mxu0 0.0
    %791 = vmatpush1.xpose.msra.mxu0 0.0
    %792 = vmatprep.subr.mxu0 0.0
    %793 = vmatpush1.xpose.msra.mxu0 0.0
    %794 = vmatprep.subr.mxu0 0.0
    %795 = vmatpush1.xpose.msra.mxu0 0.0
    %796 = vmatprep.subr.mxu0 0.0
    %797 = vmatpush1.xpose.msra.mxu0 0.0
    %798 = vmatprep.subr.mxu0 0.0
    %799 = vmatpush1.xpose.msra.mxu0 0.0
    %800 = vmatprep.subr.mxu0 0.0
    %801 = vmatpush1.xpose.msra.mxu0 0.0
    %802 = vmatprep.subr.mxu0 0.0
    %803 = vmatpush1.xpose.msra.mxu0 0.0
    %804 = vmatprep.subr.mxu0 0.0
    %805 = vmatpush1.xpose.msra.mxu0 0.0
    %806 = vmatprep.subr.mxu0 0.0
    %807 = vmatpush1.xpose.msra.mxu0 0.0
    %808 = vmatprep.subr.mxu0 0.0
    %809 = vmatpush1.xpose.msra.mxu0 0.0
    %810 = vmatprep.subr.mxu0 0.0
    %811 = vmatpush1.xpose.msra.mxu0 %v469
    %812 = vmatprep.subr.mxu0 0.0
    %813 = vmatpush2.xpose.msra.mxu0 0.0
    %814 = vmatprep.subr.mxu0 0.0
    %815 = vmatpush2.xpose.msra.mxu0 0.0
    %816 = vmatprep.subr.mxu0 0.0
    %817 = vmatpush2.xpose.msra.mxu0 0.0
    %818 = vmatprep.subr.mxu0 0.0
    %819 = vmatpush2.xpose.msra.mxu0 0.0
    %820 = vmatprep.subr.mxu0 0.0
    %821 = vmatpush2.xpose.msra.mxu0 0.0
    %822 = vmatprep.subr.mxu0 0.0
    %823 = vmatpush2.xpose.msra.mxu0 0.0
    %824 = vmatprep.subr.mxu0 0.0
    %825 = vmatpush2.xpose.msra.mxu0 0.0
    %826 = vmatprep.subr.mxu0 0.0
    %827 = vmatpush2.xpose.msra.mxu0 0.0
    %828 = vmatprep.subr.mxu0 0.0
    %829 = vmatpush2.xpose.msra.mxu0 0.0
    %830 = vmatprep.subr.mxu0 0.0
    %831 = vmatpush2.xpose.msra.mxu0 0.0
    %832 = vmatprep.subr.mxu0 0.0
    %833 = vmatpush2.xpose.msra.mxu0 0.0
    %834 = vmatprep.subr.mxu0 0.0
    %835 = vmatpush2.xpose.msra.mxu0 0.0
    %836 = vmatprep.subr.mxu0 0.0
    %837 = vmatpush2.xpose.msra.mxu0 0.0
    %838 = vmatprep.subr.mxu0 0.0
    %839 = vmatpush2.xpose.msra.mxu0 0.0
    %840 = vmatprep.subr.mxu0 0.0
    %841 = vmatpush2.xpose.msra.mxu0 0.0
    %842 = vmatprep.subr.mxu0 0.0
    %843 = vmatpush2.xpose.msra.mxu0 0.0
    %844 = vmatprep.mubr.f32.mxu0 0.0
    %845 = vmatmul.mubr.f32.gmra.mxu0 %v775
    %v846 = vpop.f32.mrf.mxu0
    %v847 = vadd.f32 0.0, %v846
    %v848 = vpop.f32.mrf.mxu0
    %849 = vmatprep.mubr.f32.mxu0 0.0
    %850 = vmatmul.mubr.f32.gmra.mxu0 %v778
    %v851 = vpop.f32.mrf.mxu0
    %v852 = vadd.f32 0.0, %v851
    %v853 = vpop.f32.mrf.mxu0
    %854 = vdwg.mxu0
    %v856 = vsel %vm115, %v205, 0
    %v859 = vsel %vm115, %v210, 0
    %861 = vmatprep.subr.mxu0 0.0
    %862 = vmatpush1.xpose.msra.mxu0 0.0
    %863 = vmatprep.subr.mxu0 0.0
    %864 = vmatpush1.xpose.msra.mxu0 0.0
    %865 = vmatprep.subr.mxu0 0.0
    %866 = vmatpush1.xpose.msra.mxu0 0.0
    %867 = vmatprep.subr.mxu0 0.0
    %868 = vmatpush1.xpose.msra.mxu0 0.0
    %869 = vmatprep.subr.mxu0 0.0
    %870 = vmatpush1.xpose.msra.mxu0 0.0
    %871 = vmatprep.subr.mxu0 0.0
    %872 = vmatpush1.xpose.msra.mxu0 0.0
    %873 = vmatprep.subr.mxu0 0.0
    %874 = vmatpush1.xpose.msra.mxu0 0.0
    %875 = vmatprep.subr.mxu0 0.0
    %876 = vmatpush1.xpose.msra.mxu0 0.0
    %877 = vmatprep.subr.mxu0 0.0
    %878 = vmatpush1.xpose.msra.mxu0 0.0
    %879 = vmatprep.subr.mxu0 0.0
    %880 = vmatpush1.xpose.msra.mxu0 0.0
    %881 = vmatprep.subr.mxu0 0.0
    %882 = vmatpush1.xpose.msra.mxu0 0.0
    %883 = vmatprep.subr.mxu0 0.0
    %884 = vmatpush1.xpose.msra.mxu0 0.0
    %885 = vmatprep.subr.mxu0 0.0
    %886 = vmatpush1.xpose.msra.mxu0 0.0
    %887 = vmatprep.subr.mxu0 0.0
    %888 = vmatpush1.xpose.msra.mxu0 0.0
    %889 = vmatprep.subr.mxu0 0.0
    %890 = vmatpush1.xpose.msra.mxu0 0.0
    %891 = vmatprep.subr.mxu0 0.0
    %892 = vmatpush1.xpose.msra.mxu0 %v472
    %893 = vmatprep.subr.mxu0 0.0
    %894 = vmatpush2.xpose.msra.mxu0 0.0
    %895 = vmatprep.subr.mxu0 0.0
    %896 = vmatpush2.xpose.msra.mxu0 0.0
    %897 = vmatprep.subr.mxu0 0.0
    %898 = vmatpush2.xpose.msra.mxu0 0.0
    %899 = vmatprep.subr.mxu0 0.0
    %900 = vmatpush2.xpose.msra.mxu0 0.0
    %901 = vmatprep.subr.mxu0 0.0
    %902 = vmatpush2.xpose.msra.mxu0 0.0
    %903 = vmatprep.subr.mxu0 0.0
    %904 = vmatpush2.xpose.msra.mxu0 0.0
    %905 = vmatprep.subr.mxu0 0.0
    %906 = vmatpush2.xpose.msra.mxu0 0.0
    %907 = vmatprep.subr.mxu0 0.0
    %908 = vmatpush2.xpose.msra.mxu0 0.0
    %909 = vmatprep.subr.mxu0 0.0
    %910 = vmatpush2.xpose.msra.mxu0 0.0
    %911 = vmatprep.subr.mxu0 0.0
    %912 = vmatpush2.xpose.msra.mxu0 0.0
    %913 = vmatprep.subr.mxu0 0.0
    %914 = vmatpush2.xpose.msra.mxu0 0.0
    %915 = vmatprep.subr.mxu0 0.0
    %916 = vmatpush2.xpose.msra.mxu0 0.0
    %917 = vmatprep.subr.mxu0 0.0
    %918 = vmatpush2.xpose.msra.mxu0 0.0
    %919 = vmatprep.subr.mxu0 0.0
    %920 = vmatpush2.xpose.msra.mxu0 0.0
    %921 = vmatprep.subr.mxu0 0.0
    %922 = vmatpush2.xpose.msra.mxu0 0.0
    %923 = vmatprep.subr.mxu0 0.0
    %924 = vmatpush2.xpose.msra.mxu0 0.0
    %925 = vmatprep.mubr.f32.mxu0 0.0
    %926 = vmatmul.mubr.f32.gmra.mxu0 %v856
    %v927 = vpop.f32.mrf.mxu0
    %v928 = vadd.f32 0.0, %v927
    %v929 = vpop.f32.mrf.mxu0
    %930 = vmatprep.mubr.f32.mxu0 0.0
    %931 = vmatmul.mubr.f32.gmra.mxu0 %v859
    %v932 = vpop.f32.mrf.mxu0
    %v933 = vadd.f32 0.0, %v932
    %v934 = vpop.f32.mrf.mxu0
    %935 = vdwg.mxu0
    %v937 = vsel %vm115, %v280, 0
    %v940 = vsel %vm115, %v285, 0
    %942 = vmatprep.subr.mxu0 0.0
    %943 = vmatpush1.xpose.msra.mxu0 0.0
    %944 = vmatprep.subr.mxu0 0.0
    %945 = vmatpush1.xpose.msra.mxu0 0.0
    %946 = vmatprep.subr.mxu0 0.0
    %947 = vmatpush1.xpose.msra.mxu0 0.0
    %948 = vmatprep.subr.mxu0 0.0
    %949 = vmatpush1.xpose.msra.mxu0 0.0
    %950 = vmatprep.subr.mxu0 0.0
    %951 = vmatpush1.xpose.msra.mxu0 0.0
    %952 = vmatprep.subr.mxu0 0.0
    %953 = vmatpush1.xpose.msra.mxu0 0.0
    %954 = vmatprep.subr.mxu0 0.0
    %955 = vmatpush1.xpose.msra.mxu0 0.0
    %956 = vmatprep.subr.mxu0 0.0
    %957 = vmatpush1.xpose.msra.mxu0 0.0
    %958 = vmatprep.subr.mxu0 0.0
    %959 = vmatpush1.xpose.msra.mxu0 0.0
    %960 = vmatprep.subr.mxu0 0.0
    %961 = vmatpush1.xpose.msra.mxu0 0.0
    %962 = vmatprep.subr.mxu0 0.0
    %963 = vmatpush1.xpose.msra.mxu0 0.0
    %964 = vmatprep.subr.mxu0 0.0
    %965 = vmatpush1.xpose.msra.mxu0 0.0
    %966 = vmatprep.subr.mxu0 0.0
    %967 = vmatpush1.xpose.msra.mxu0 0.0
    %968 = vmatprep.subr.mxu0 0.0
    %969 = vmatpush1.xpose.msra.mxu0 0.0
    %970 = vmatprep.subr.mxu0 0.0
    %971 = vmatpush1.xpose.msra.mxu0 0.0
    %972 = vmatprep.subr.mxu0 0.0
    %973 = vmatpush1.xpose.msra.mxu0 %v469
    %974 = vmatprep.subr.mxu0 0.0
    %975 = vmatpush2.xpose.msra.mxu0 0.0
    %976 = vmatprep.subr.mxu0 0.0
    %977 = vmatpush2.xpose.msra.mxu0 0.0
    %978 = vmatprep.subr.mxu0 0.0
    %979 = vmatpush2.xpose.msra.mxu0 0.0
    %980 = vmatprep.subr.mxu0 0.0
    %981 = vmatpush2.xpose.msra.mxu0 0.0
    %982 = vmatprep.subr.mxu0 0.0
    %983 = vmatpush2.xpose.msra.mxu0 0.0
    %984 = vmatprep.subr.mxu0 0.0
    %985 = vmatpush2.xpose.msra.mxu0 0.0
    %986 = vmatprep.subr.mxu0 0.0
    %987 = vmatpush2.xpose.msra.mxu0 0.0
    %988 = vmatprep.subr.mxu0 0.0
    %989 = vmatpush2.xpose.msra.mxu0 0.0
    %990 = vmatprep.subr.mxu0 0.0
    %991 = vmatpush2.xpose.msra.mxu0 0.0
    %992 = vmatprep.subr.mxu0 0.0
    %993 = vmatpush2.xpose.msra.mxu0 0.0
    %994 = vmatprep.subr.mxu0 0.0
    %995 = vmatpush2.xpose.msra.mxu0 0.0
    %996 = vmatprep.subr.mxu0 0.0
    %997 = vmatpush2.xpose.msra.mxu0 0.0
    %998 = vmatprep.subr.mxu0 0.0
    %999 = vmatpush2.xpose.msra.mxu0 0.0
    %1000 = vmatprep.subr.mxu0 0.0
    %1001 = vmatpush2.xpose.msra.mxu0 0.0
    %1002 = vmatprep.subr.mxu0 0.0
    %1003 = vmatpush2.xpose.msra.mxu0 0.0
    %1004 = vmatprep.subr.mxu0 0.0
    %1005 = vmatpush2.xpose.msra.mxu0 0.0
    %1006 = vmatprep.mubr.f32.mxu0 0.0
    %1007 = vmatmul.mubr.f32.gmra.mxu0 %v937
    %v1008 = vpop.f32.mrf.mxu0
    %v1009 = vadd.f32 0.0, %v1008
    %v1010 = vpop.f32.mrf.mxu0
    %1011 = vmatprep.mubr.f32.mxu0 0.0
    %1012 = vmatmul.mubr.f32.gmra.mxu0 %v940
    %v1013 = vpop.f32.mrf.mxu0
    %v1014 = vadd.f32 0.0, %v1013
    %v1015 = vpop.f32.mrf.mxu0
    %1016 = vdwg.mxu0
    %v1018 = vsel %vm115, %v290, 0
    %v1021 = vsel %vm115, %v295, 0
    %1023 = vmatprep.subr.mxu0 0.0
    %1024 = vmatpush1.xpose.msra.mxu0 0.0
    %1025 = vmatprep.subr.mxu0 0.0
    %1026 = vmatpush1.xpose.msra.mxu0 0.0
    %1027 = vmatprep.subr.mxu0 0.0
    %1028 = vmatpush1.xpose.msra.mxu0 0.0
    %1029 = vmatprep.subr.mxu0 0.0
    %1030 = vmatpush1.xpose.msra.mxu0 0.0
    %1031 = vmatprep.subr.mxu0 0.0
    %1032 = vmatpush1.xpose.msra.mxu0 0.0
    %1033 = vmatprep.subr.mxu0 0.0
    %1034 = vmatpush1.xpose.msra.mxu0 0.0
    %1035 = vmatprep.subr.mxu0 0.0
    %1036 = vmatpush1.xpose.msra.mxu0 0.0
    %1037 = vmatprep.subr.mxu0 0.0
    %1038 = vmatpush1.xpose.msra.mxu0 0.0
    %1039 = vmatprep.subr.mxu0 0.0
    %1040 = vmatpush1.xpose.msra.mxu0 0.0
    %1041 = vmatprep.subr.mxu0 0.0
    %1042 = vmatpush1.xpose.msra.mxu0 0.0
    %1043 = vmatprep.subr.mxu0 0.0
    %1044 = vmatpush1.xpose.msra.mxu0 0.0
    %1045 = vmatprep.subr.mxu0 0.0
    %1046 = vmatpush1.xpose.msra.mxu0 0.0
    %1047 = vmatprep.subr.mxu0 0.0
    %1048 = vmatpush1.xpose.msra.mxu0 0.0
    %1049 = vmatprep.subr.mxu0 0.0
    %1050 = vmatpush1.xpose.msra.mxu0 0.0
    %1051 = vmatprep.subr.mxu0 0.0
    %1052 = vmatpush1.xpose.msra.mxu0 0.0
    %1053 = vmatprep.subr.mxu0 0.0
    %1054 = vmatpush1.xpose.msra.mxu0 %v472
    %1055 = vmatprep.subr.mxu0 0.0
    %1056 = vmatpush2.xpose.msra.mxu0 0.0
    %1057 = vmatprep.subr.mxu0 0.0
    %1058 = vmatpush2.xpose.msra.mxu0 0.0
    %1059 = vmatprep.subr.mxu0 0.0
    %1060 = vmatpush2.xpose.msra.mxu0 0.0
    %1061 = vmatprep.subr.mxu0 0.0
    %1062 = vmatpush2.xpose.msra.mxu0 0.0
    %1063 = vmatprep.subr.mxu0 0.0
    %1064 = vmatpush2.xpose.msra.mxu0 0.0
    %1065 = vmatprep.subr.mxu0 0.0
    %1066 = vmatpush2.xpose.msra.mxu0 0.0
    %1067 = vmatprep.subr.mxu0 0.0
    %1068 = vmatpush2.xpose.msra.mxu0 0.0
    %1069 = vmatprep.subr.mxu0 0.0
    %1070 = vmatpush2.xpose.msra.mxu0 0.0
    %1071 = vmatprep.subr.mxu0 0.0
    %1072 = vmatpush2.xpose.msra.mxu0 0.0
    %1073 = vmatprep.subr.mxu0 0.0
    %1074 = vmatpush2.xpose.msra.mxu0 0.0
    %1075 = vmatprep.subr.mxu0 0.0
    %1076 = vmatpush2.xpose.msra.mxu0 0.0
    %1077 = vmatprep.subr.mxu0 0.0
    %1078 = vmatpush2.xpose.msra.mxu0 0.0
    %1079 = vmatprep.subr.mxu0 0.0
    %1080 = vmatpush2.xpose.msra.mxu0 0.0
    %1081 = vmatprep.subr.mxu0 0.0
    %1082 = vmatpush2.xpose.msra.mxu0 0.0
    %1083 = vmatprep.subr.mxu0 0.0
    %1084 = vmatpush2.xpose.msra.mxu0 0.0
    %1085 = vmatprep.subr.mxu0 0.0
    %1086 = vmatpush2.xpose.msra.mxu0 0.0
    %1087 = vmatprep.mubr.f32.mxu0 0.0
    %1088 = vmatmul.mubr.f32.gmra.mxu0 %v1018
    %v1089 = vpop.f32.mrf.mxu0
    %v1090 = vadd.f32 0.0, %v1089
    %v1091 = vpop.f32.mrf.mxu0
    %1092 = vmatprep.mubr.f32.mxu0 0.0
    %1093 = vmatmul.mubr.f32.gmra.mxu0 %v1021
    %v1094 = vpop.f32.mrf.mxu0
    %v1095 = vadd.f32 0.0, %v1094
    %v1096 = vpop.f32.mrf.mxu0
    %1097 = vdwg.mxu0
    %v1099 = vsel %vm115, %v365, 0
    %v1102 = vsel %vm115, %v370, 0
    %1104 = vmatprep.subr.mxu0 0.0
    %1105 = vmatpush1.xpose.msra.mxu0 0.0
    %1106 = vmatprep.subr.mxu0 0.0
    %1107 = vmatpush1.xpose.msra.mxu0 0.0
    %1108 = vmatprep.subr.mxu0 0.0
    %1109 = vmatpush1.xpose.msra.mxu0 0.0
    %1110 = vmatprep.subr.mxu0 0.0
    %1111 = vmatpush1.xpose.msra.mxu0 0.0
    %1112 = vmatprep.subr.mxu0 0.0
    %1113 = vmatpush1.xpose.msra.mxu0 0.0
    %1114 = vmatprep.subr.mxu0 0.0
    %1115 = vmatpush1.xpose.msra.mxu0 0.0
    %1116 = vmatprep.subr.mxu0 0.0
    %1117 = vmatpush1.xpose.msra.mxu0 0.0
    %1118 = vmatprep.subr.mxu0 0.0
    %1119 = vmatpush1.xpose.msra.mxu0 0.0
    %1120 = vmatprep.subr.mxu0 0.0
    %1121 = vmatpush1.xpose.msra.mxu0 0.0
    %1122 = vmatprep.subr.mxu0 0.0
    %1123 = vmatpush1.xpose.msra.mxu0 0.0
    %1124 = vmatprep.subr.mxu0 0.0
    %1125 = vmatpush1.xpose.msra.mxu0 0.0
    %1126 = vmatprep.subr.mxu0 0.0
    %1127 = vmatpush1.xpose.msra.mxu0 0.0
    %1128 = vmatprep.subr.mxu0 0.0
    %1129 = vmatpush1.xpose.msra.mxu0 0.0
    %1130 = vmatprep.subr.mxu0 0.0
    %1131 = vmatpush1.xpose.msra.mxu0 0.0
    %1132 = vmatprep.subr.mxu0 0.0
    %1133 = vmatpush1.xpose.msra.mxu0 0.0
    %1134 = vmatprep.subr.mxu0 0.0
    %1135 = vmatpush1.xpose.msra.mxu0 %v469
    %1136 = vmatprep.subr.mxu0 0.0
    %1137 = vmatpush2.xpose.msra.mxu0 0.0
    %1138 = vmatprep.subr.mxu0 0.0
    %1139 = vmatpush2.xpose.msra.mxu0 0.0
    %1140 = vmatprep.subr.mxu0 0.0
    %1141 = vmatpush2.xpose.msra.mxu0 0.0
    %1142 = vmatprep.subr.mxu0 0.0
    %1143 = vmatpush2.xpose.msra.mxu0 0.0
    %1144 = vmatprep.subr.mxu0 0.0
    %1145 = vmatpush2.xpose.msra.mxu0 0.0
    %1146 = vmatprep.subr.mxu0 0.0
    %1147 = vmatpush2.xpose.msra.mxu0 0.0
    %1148 = vmatprep.subr.mxu0 0.0
    %1149 = vmatpush2.xpose.msra.mxu0 0.0
    %1150 = vmatprep.subr.mxu0 0.0
    %1151 = vmatpush2.xpose.msra.mxu0 0.0
    %1152 = vmatprep.subr.mxu0 0.0
    %1153 = vmatpush2.xpose.msra.mxu0 0.0
    %1154 = vmatprep.subr.mxu0 0.0
    %1155 = vmatpush2.xpose.msra.mxu0 0.0
    %1156 = vmatprep.subr.mxu0 0.0
    %1157 = vmatpush2.xpose.msra.mxu0 0.0
    %1158 = vmatprep.subr.mxu0 0.0
    %1159 = vmatpush2.xpose.msra.mxu0 0.0
    %1160 = vmatprep.subr.mxu0 0.0
    %1161 = vmatpush2.xpose.msra.mxu0 0.0
    %1162 = vmatprep.subr.mxu0 0.0
    %1163 = vmatpush2.xpose.msra.mxu0 0.0
    %1164 = vmatprep.subr.mxu0 0.0
    %1165 = vmatpush2.xpose.msra.mxu0 0.0
    %1166 = vmatprep.subr.mxu0 0.0
    %1167 = vmatpush2.xpose.msra.mxu0 0.0
    %1168 = vmatprep.mubr.f32.mxu0 0.0
    %1169 = vmatmul.mubr.f32.gmra.mxu0 %v1099
    %v1170 = vpop.f32.mrf.mxu0
    %v1171 = vadd.f32 0.0, %v1170
    %v1172 = vpop.f32.mrf.mxu0
    %1173 = vmatprep.mubr.f32.mxu0 0.0
    %1174 = vmatmul.mubr.f32.gmra.mxu0 %v1102
    %v1175 = vpop.f32.mrf.mxu0
    %v1176 = vadd.f32 0.0, %v1175
    %v1177 = vpop.f32.mrf.mxu0
    %1178 = vdwg.mxu0
    %v1180 = vsel %vm115, %v375, 0
    %v1183 = vsel %vm115, %v380, 0
    %1185 = vmatprep.subr.mxu0 0.0
    %1186 = vmatpush1.xpose.msra.mxu0 0.0
    %1187 = vmatprep.subr.mxu0 0.0
    %1188 = vmatpush1.xpose.msra.mxu0 0.0
    %1189 = vmatprep.subr.mxu0 0.0
    %1190 = vmatpush1.xpose.msra.mxu0 0.0
    %1191 = vmatprep.subr.mxu0 0.0
    %1192 = vmatpush1.xpose.msra.mxu0 0.0
    %1193 = vmatprep.subr.mxu0 0.0
    %1194 = vmatpush1.xpose.msra.mxu0 0.0
    %1195 = vmatprep.subr.mxu0 0.0
    %1196 = vmatpush1.xpose.msra.mxu0 0.0
    %1197 = vmatprep.subr.mxu0 0.0
    %1198 = vmatpush1.xpose.msra.mxu0 0.0
    %1199 = vmatprep.subr.mxu0 0.0
    %1200 = vmatpush1.xpose.msra.mxu0 0.0
    %1201 = vmatprep.subr.mxu0 0.0
    %1202 = vmatpush1.xpose.msra.mxu0 0.0
    %1203 = vmatprep.subr.mxu0 0.0
    %1204 = vmatpush1.xpose.msra.mxu0 0.0
    %1205 = vmatprep.subr.mxu0 0.0
    %1206 = vmatpush1.xpose.msra.mxu0 0.0
    %1207 = vmatprep.subr.mxu0 0.0
    %1208 = vmatpush1.xpose.msra.mxu0 0.0
    %1209 = vmatprep.subr.mxu0 0.0
    %1210 = vmatpush1.xpose.msra.mxu0 0.0
    %1211 = vmatprep.subr.mxu0 0.0
    %1212 = vmatpush1.xpose.msra.mxu0 0.0
    %1213 = vmatprep.subr.mxu0 0.0
    %1214 = vmatpush1.xpose.msra.mxu0 0.0
    %1215 = vmatprep.subr.mxu0 0.0
    %1216 = vmatpush1.xpose.msra.mxu0 %v472
    %1217 = vmatprep.subr.mxu0 0.0
    %1218 = vmatpush2.xpose.msra.mxu0 0.0
    %1219 = vmatprep.subr.mxu0 0.0
    %1220 = vmatpush2.xpose.msra.mxu0 0.0
    %1221 = vmatprep.subr.mxu0 0.0
    %1222 = vmatpush2.xpose.msra.mxu0 0.0
    %1223 = vmatprep.subr.mxu0 0.0
    %1224 = vmatpush2.xpose.msra.mxu0 0.0
    %1225 = vmatprep.subr.mxu0 0.0
    %1226 = vmatpush2.xpose.msra.mxu0 0.0
    %1227 = vmatprep.subr.mxu0 0.0
    %1228 = vmatpush2.xpose.msra.mxu0 0.0
    %1229 = vmatprep.subr.mxu0 0.0
    %1230 = vmatpush2.xpose.msra.mxu0 0.0
    %1231 = vmatprep.subr.mxu0 0.0
    %1232 = vmatpush2.xpose.msra.mxu0 0.0
    %1233 = vmatprep.subr.mxu0 0.0
    %1234 = vmatpush2.xpose.msra.mxu0 0.0
    %1235 = vmatprep.subr.mxu0 0.0
    %1236 = vmatpush2.xpose.msra.mxu0 0.0
    %1237 = vmatprep.subr.mxu0 0.0
    %1238 = vmatpush2.xpose.msra.mxu0 0.0
    %1239 = vmatprep.subr.mxu0 0.0
    %1240 = vmatpush2.xpose.msra.mxu0 0.0
    %1241 = vmatprep.subr.mxu0 0.0
    %1242 = vmatpush2.xpose.msra.mxu0 0.0
    %1243 = vmatprep.subr.mxu0 0.0
    %1244 = vmatpush2.xpose.msra.mxu0 0.0
    %1245 = vmatprep.subr.mxu0 0.0
    %1246 = vmatpush2.xpose.msra.mxu0 0.0
    %1247 = vmatprep.subr.mxu0 0.0
    %1248 = vmatpush2.xpose.msra.mxu0 0.0
    %1249 = vmatprep.mubr.f32.mxu0 0.0
    %1250 = vmatmul.mubr.f32.gmra.mxu0 %v1180
    %v1251 = vpop.f32.mrf.mxu0
    %v1252 = vadd.f32 0.0, %v1251
    %v1253 = vpop.f32.mrf.mxu0
    %1254 = vmatprep.mubr.f32.mxu0 0.0
    %1255 = vmatmul.mubr.f32.gmra.mxu0 %v1183
    %v1256 = vpop.f32.mrf.mxu0
    %v1257 = vadd.f32 0.0, %v1256
    %v1258 = vpop.f32.mrf.mxu0
    %1259 = vdwg.mxu0
    %v1261 = vsel %vm115, %v450, 0
    %v1264 = vsel %vm115, %v455, 0
    %1266 = vmatprep.subr.mxu0 0.0
    %1267 = vmatpush1.xpose.msra.mxu0 0.0
    %1268 = vmatprep.subr.mxu0 0.0
    %1269 = vmatpush1.xpose.msra.mxu0 0.0
    %1270 = vmatprep.subr.mxu0 0.0
    %1271 = vmatpush1.xpose.msra.mxu0 0.0
    %1272 = vmatprep.subr.mxu0 0.0
    %1273 = vmatpush1.xpose.msra.mxu0 0.0
    %1274 = vmatprep.subr.mxu0 0.0
    %1275 = vmatpush1.xpose.msra.mxu0 0.0
    %1276 = vmatprep.subr.mxu0 0.0
    %1277 = vmatpush1.xpose.msra.mxu0 0.0
    %1278 = vmatprep.subr.mxu0 0.0
    %1279 = vmatpush1.xpose.msra.mxu0 0.0
    %1280 = vmatprep.subr.mxu0 0.0
    %1281 = vmatpush1.xpose.msra.mxu0 0.0
    %1282 = vmatprep.subr.mxu0 0.0
    %1283 = vmatpush1.xpose.msra.mxu0 0.0
    %1284 = vmatprep.subr.mxu0 0.0
    %1285 = vmatpush1.xpose.msra.mxu0 0.0
    %1286 = vmatprep.subr.mxu0 0.0
    %1287 = vmatpush1.xpose.msra.mxu0 0.0
    %1288 = vmatprep.subr.mxu0 0.0
    %1289 = vmatpush1.xpose.msra.mxu0 0.0
    %1290 = vmatprep.subr.mxu0 0.0
    %1291 = vmatpush1.xpose.msra.mxu0 0.0
    %1292 = vmatprep.subr.mxu0 0.0
    %1293 = vmatpush1.xpose.msra.mxu0 0.0
    %1294 = vmatprep.subr.mxu0 0.0
    %1295 = vmatpush1.xpose.msra.mxu0 0.0
    %1296 = vmatprep.subr.mxu0 0.0
    %1297 = vmatpush1.xpose.msra.mxu0 %v469
    %1298 = vmatprep.subr.mxu0 0.0
    %1299 = vmatpush2.xpose.msra.mxu0 0.0
    %1300 = vmatprep.subr.mxu0 0.0
    %1301 = vmatpush2.xpose.msra.mxu0 0.0
    %1302 = vmatprep.subr.mxu0 0.0
    %1303 = vmatpush2.xpose.msra.mxu0 0.0
    %1304 = vmatprep.subr.mxu0 0.0
    %1305 = vmatpush2.xpose.msra.mxu0 0.0
    %1306 = vmatprep.subr.mxu0 0.0
    %1307 = vmatpush2.xpose.msra.mxu0 0.0
    %1308 = vmatprep.subr.mxu0 0.0
    %1309 = vmatpush2.xpose.msra.mxu0 0.0
    %1310 = vmatprep.subr.mxu0 0.0
    %1311 = vmatpush2.xpose.msra.mxu0 0.0
    %1312 = vmatprep.subr.mxu0 0.0
    %1313 = vmatpush2.xpose.msra.mxu0 0.0
    %1314 = vmatprep.subr.mxu0 0.0
    %1315 = vmatpush2.xpose.msra.mxu0 0.0
    %1316 = vmatprep.subr.mxu0 0.0
    %1317 = vmatpush2.xpose.msra.mxu0 0.0
    %1318 = vmatprep.subr.mxu0 0.0
    %1319 = vmatpush2.xpose.msra.mxu0 0.0
    %1320 = vmatprep.subr.mxu0 0.0
    %1321 = vmatpush2.xpose.msra.mxu0 0.0
    %1322 = vmatprep.subr.mxu0 0.0
    %1323 = vmatpush2.xpose.msra.mxu0 0.0
    %1324 = vmatprep.subr.mxu0 0.0
    %1325 = vmatpush2.xpose.msra.mxu0 0.0
    %1326 = vmatprep.subr.mxu0 0.0
    %1327 = vmatpush2.xpose.msra.mxu0 0.0
    %1328 = vmatprep.subr.mxu0 0.0
    %1329 = vmatpush2.xpose.msra.mxu0 0.0
    %1330 = vmatprep.mubr.f32.mxu0 0.0
    %1331 = vmatmul.mubr.f32.gmra.mxu0 %v1261
    %v1332 = vpop.f32.mrf.mxu0
    %v1333 = vadd.f32 0.0, %v1332
    %v1334 = vpop.f32.mrf.mxu0
    %1335 = vmatprep.mubr.f32.mxu0 0.0
    %1336 = vmatmul.mubr.f32.gmra.mxu0 %v1264
    %v1337 = vpop.f32.mrf.mxu0
    %v1338 = vadd.f32 0.0, %v1337
    %v1339 = vpop.f32.mrf.mxu0
    %1340 = vdwg.mxu0
    %v1342 = vsel %vm115, %v460, 0
    %v1345 = vsel %vm115, %v465, 0
    %1347 = vmatprep.subr.mxu0 0.0
    %1348 = vmatpush1.xpose.msra.mxu0 0.0
    %1349 = vmatprep.subr.mxu0 0.0
    %1350 = vmatpush1.xpose.msra.mxu0 0.0
    %1351 = vmatprep.subr.mxu0 0.0
    %1352 = vmatpush1.xpose.msra.mxu0 0.0
    %1353 = vmatprep.subr.mxu0 0.0
    %1354 = vmatpush1.xpose.msra.mxu0 0.0
    %1355 = vmatprep.subr.mxu0 0.0
    %1356 = vmatpush1.xpose.msra.mxu0 0.0
    %1357 = vmatprep.subr.mxu0 0.0
    %1358 = vmatpush1.xpose.msra.mxu0 0.0
    %1359 = vmatprep.subr.mxu0 0.0
    %1360 = vmatpush1.xpose.msra.mxu0 0.0
    %1361 = vmatprep.subr.mxu0 0.0
    %1362 = vmatpush1.xpose.msra.mxu0 0.0
    %1363 = vmatprep.subr.mxu0 0.0
    %1364 = vmatpush1.xpose.msra.mxu0 0.0
    %1365 = vmatprep.subr.mxu0 0.0
    %1366 = vmatpush1.xpose.msra.mxu0 0.0
    %1367 = vmatprep.subr.mxu0 0.0
    %1368 = vmatpush1.xpose.msra.mxu0 0.0
    %1369 = vmatprep.subr.mxu0 0.0
    %1370 = vmatpush1.xpose.msra.mxu0 0.0
    %1371 = vmatprep.subr.mxu0 0.0
    %1372 = vmatpush1.xpose.msra.mxu0 0.0
    %1373 = vmatprep.subr.mxu0 0.0
    %1374 = vmatpush1.xpose.msra.mxu0 0.0
    %1375 = vmatprep.subr.mxu0 0.0
    %1376 = vmatpush1.xpose.msra.mxu0 0.0
    %1377 = vmatprep.subr.mxu0 0.0
    %1378 = vmatpush1.xpose.msra.mxu0 %v472
    %1379 = vmatprep.subr.mxu0 0.0
    %1380 = vmatpush2.xpose.msra.mxu0 0.0
    %1381 = vmatprep.subr.mxu0 0.0
    %1382 = vmatpush2.xpose.msra.mxu0 0.0
    %1383 = vmatprep.subr.mxu0 0.0
    %1384 = vmatpush2.xpose.msra.mxu0 0.0
    %1385 = vmatprep.subr.mxu0 0.0
    %1386 = vmatpush2.xpose.msra.mxu0 0.0
    %1387 = vmatprep.subr.mxu0 0.0
    %1388 = vmatpush2.xpose.msra.mxu0 0.0
    %1389 = vmatprep.subr.mxu0 0.0
    %1390 = vmatpush2.xpose.msra.mxu0 0.0
    %1391 = vmatprep.subr.mxu0 0.0
    %1392 = vmatpush2.xpose.msra.mxu0 0.0
    %1393 = vmatprep.subr.mxu0 0.0
    %1394 = vmatpush2.xpose.msra.mxu0 0.0
    %1395 = vmatprep.subr.mxu0 0.0
    %1396 = vmatpush2.xpose.msra.mxu0 0.0
    %1397 = vmatprep.subr.mxu0 0.0
    %1398 = vmatpush2.xpose.msra.mxu0 0.0
    %1399 = vmatprep.subr.mxu0 0.0
    %1400 = vmatpush2.xpose.msra.mxu0 0.0
    %1401 = vmatprep.subr.mxu0 0.0
    %1402 = vmatpush2.xpose.msra.mxu0 0.0
    %1403 = vmatprep.subr.mxu0 0.0
    %1404 = vmatpush2.xpose.msra.mxu0 0.0
    %1405 = vmatprep.subr.mxu0 0.0
    %1406 = vmatpush2.xpose.msra.mxu0 0.0
    %1407 = vmatprep.subr.mxu0 0.0
    %1408 = vmatpush2.xpose.msra.mxu0 0.0
    %1409 = vmatprep.subr.mxu0 0.0
    %1410 = vmatpush2.xpose.msra.mxu0 0.0
    %1411 = vmatprep.mubr.f32.mxu0 0.0
    %1412 = vmatmul.mubr.f32.gmra.mxu0 %v1342
    %v1413 = vpop.f32.mrf.mxu0
    %v1414 = vadd.f32 0.0, %v1413
    %v1415 = vpop.f32.mrf.mxu0
    %1416 = vmatprep.mubr.f32.mxu0 0.0
    %1417 = vmatmul.mubr.f32.gmra.mxu0 %v1345
    %v1418 = vpop.f32.mrf.mxu0
    %v1419 = vadd.f32 0.0, %v1418
    %v1420 = vpop.f32.mrf.mxu0
    %1421 = vdwg.mxu0
    %vm1422 = vcmask 64512
    %v1423 = vsel %vm1422, %v847, -inf
    %v1424 = vsel %vm1422, %v1009, -inf
    %v1425 = vmax.f32 %v1423, %v1424
    %v1426 = vsel %vm1422, %v1171, -inf
    %v1427 = vmax.f32 %v1425, %v1426
    %v1428 = vsel %vm1422, %v1333, -inf
    %v1429 = vmax.f32 %v1427, %v1428
    %v1430 = vsel %vm1422, %v852, -inf
    %v1431 = vsel %vm1422, %v1014, -inf
    %v1432 = vmax.f32 %v1430, %v1431
    %v1433 = vsel %vm1422, %v1176, -inf
    %v1434 = vmax.f32 %v1432, %v1433
    %v1435 = vsel %vm1422, %v1338, -inf
    %v1436 = vmax.f32 %v1434, %v1435
    %v1437 = vsel %vm1422, %v928, -inf
    %v1438 = vsel %vm1422, %v1090, -inf
    %v1439 = vmax.f32 %v1437, %v1438
    %v1440 = vsel %vm1422, %v1252, -inf
    %v1441 = vmax.f32 %v1439, %v1440
    %v1442 = vsel %vm1422, %v1414, -inf
    %v1443 = vmax.f32 %v1441, %v1442
    %v1444 = vsel %vm1422, %v933, -inf
    %v1445 = vsel %vm1422, %v1095, -inf
    %v1446 = vmax.f32 %v1444, %v1445
    %v1447 = vsel %vm1422, %v1257, -inf
    %v1448 = vmax.f32 %v1446, %v1447
    %v1449 = vsel %vm1422, %v1419, -inf
    %v1450 = vmax.f32 %v1448, %v1449
    %v1451 = vsub.f32 %v847, %v1429
    %v1452 = vsub.f32 %v852, %v1436
    %v1453 = vsub.f32 %v928, %v1443
    %v1454 = vsub.f32 %v933, %v1450
    %v1455 = vsub.f32 %v1009, %v1429
    %v1456 = vsub.f32 %v1014, %v1436
    %v1457 = vsub.f32 %v1090, %v1443
    %v1458 = vsub.f32 %v1095, %v1450
    %v1459 = vsub.f32 %v1171, %v1429
    %v1460 = vsub.f32 %v1176, %v1436
    %v1461 = vsub.f32 %v1252, %v1443
    %v1462 = vsub.f32 %v1257, %v1450
    %v1463 = vsub.f32 %v1333, %v1429
    %v1464 = vsub.f32 %v1338, %v1436
    %v1465 = vsub.f32 %v1414, %v1443
    %v1466 = vsub.f32 %v1419, %v1450
    %v1467 = vmul.f32 %v1451, 1.442695
    %v1468 = vpow.pop %v1467
    %v1469 = vmul.f32 %v1452, 1.442695
    %v1470 = vpow.pop %v1469
    %v1471 = vmul.f32 %v1453, 1.442695
    %v1472 = vpow.pop %v1471
    %v1473 = vmul.f32 %v1454, 1.442695
    %v1474 = vpow.pop %v1473
    %v1475 = vmul.f32 %v1455, 1.442695
    %v1476 = vpow.pop %v1475
    %v1477 = vmul.f32 %v1456, 1.442695
    %v1478 = vpow.pop %v1477
    %v1479 = vmul.f32 %v1457, 1.442695
    %v1480 = vpow.pop %v1479
    %v1481 = vmul.f32 %v1458, 1.442695
    %v1482 = vpow.pop %v1481
    %v1483 = vmul.f32 %v1459, 1.442695
    %v1484 = vpow.pop %v1483
    %v1485 = vmul.f32 %v1460, 1.442695
    %v1486 = vpow.pop %v1485
    %v1487 = vmul.f32 %v1461, 1.442695
    %v1488 = vpow.pop %v1487
    %v1489 = vmul.f32 %v1462, 1.442695
    %v1490 = vpow.pop %v1489
    %v1491 = vmul.f32 %v1463, 1.442695
    %v1492 = vpow.pop %v1491
    %v1493 = vmul.f32 %v1464, 1.442695
    %v1494 = vpow.pop %v1493
    %v1495 = vmul.f32 %v1465, 1.442695
    %v1496 = vpow.pop %v1495
    %v1497 = vmul.f32 %v1466, 1.442695
    %v1498 = vpow.pop %v1497
    %v1499 = vsel %vm1422, %v1468, 0.0
    %v1500 = vsel %vm1422, %v1476, 0.0
    %v1501 = vadd.f32 %v1499, %v1500
    %v1502 = vsel %vm1422, %v1484, 0.0
    %v1503 = vadd.f32 %v1501, %v1502
    %v1504 = vsel %vm1422, %v1492, 0.0
    %v1505 = vadd.f32 %v1503, %v1504
    %v1506 = vsel %vm1422, %v1470, 0.0
    %v1507 = vsel %vm1422, %v1478, 0.0
    %v1508 = vadd.f32 %v1506, %v1507
    %v1509 = vsel %vm1422, %v1486, 0.0
    %v1510 = vadd.f32 %v1508, %v1509
    %v1511 = vsel %vm1422, %v1494, 0.0
    %v1512 = vadd.f32 %v1510, %v1511
    %v1513 = vsel %vm1422, %v1472, 0.0
    %v1514 = vsel %vm1422, %v1480, 0.0
    %v1515 = vadd.f32 %v1513, %v1514
    %v1516 = vsel %vm1422, %v1488, 0.0
    %v1517 = vadd.f32 %v1515, %v1516
    %v1518 = vsel %vm1422, %v1496, 0.0
    %v1519 = vadd.f32 %v1517, %v1518
    %v1520 = vsel %vm1422, %v1474, 0.0
    %v1521 = vsel %vm1422, %v1482, 0.0
    %v1522 = vadd.f32 %v1520, %v1521
    %v1523 = vsel %vm1422, %v1490, 0.0
    %v1524 = vadd.f32 %v1522, %v1523
    %v1525 = vsel %vm1422, %v1498, 0.0
    %v1526 = vadd.f32 %v1524, %v1525
    %v1527 = vrcp.pop %v1505
    %v1528 = vrcp.pop %v1512
    %v1529 = vrcp.pop %v1519
    %v1530 = vrcp.pop %v1526
    %v1531 = vmul.f32 %v1468, %v1527
    %v1532 = vmul.f32 %v1470, %v1528
    %v1533 = vmul.f32 %v1472, %v1529
    %v1534 = vmul.f32 %v1474, %v1530
    %v1535 = vmul.f32 %v1476, %v1527
    %v1536 = vmul.f32 %v1478, %v1528
    %v1537 = vmul.f32 %v1480, %v1529
    %v1538 = vmul.f32 %v1482, %v1530
    %v1539 = vmul.f32 %v1484, %v1527
    %v1540 = vmul.f32 %v1486, %v1528
    %v1541 = vmul.f32 %v1488, %v1529
    %v1542 = vmul.f32 %v1490, %v1530
    %v1543 = vmul.f32 %v1492, %v1527
    %v1544 = vmul.f32 %v1494, %v1528
    %v1545 = vmul.f32 %v1496, %v1529
    %v1546 = vmul.f32 %v1498, %v1530
    %v1548 = vsel %vm1422, %v1531, 0
    %v1551 = vsel %vm1422, %v1532, 0
    %1553 = vmatprep.subr.mxu0 0.0
    %1554 = vmatpush1.msra.mxu0 0.0
    %1555 = vmatprep.subr.mxu0 0.0
    %1556 = vmatpush1.msra.mxu0 0.0
    %1557 = vmatprep.subr.mxu0 0.0
    %1558 = vmatpush1.msra.mxu0 0.0
    %1559 = vmatprep.subr.mxu0 0.0
    %1560 = vmatpush1.msra.mxu0 0.0
    %1561 = vmatprep.subr.mxu0 0.0
    %1562 = vmatpush1.msra.mxu0 0.0
    %1563 = vmatprep.subr.mxu0 0.0
    %1564 = vmatpush1.msra.mxu0 0.0
    %1565 = vmatprep.subr.mxu0 0.0
    %1566 = vmatpush1.msra.mxu0 0.0
    %1567 = vmatprep.subr.mxu0 0.0
    %1568 = vmatpush1.msra.mxu0 0.0
    %1569 = vmatprep.subr.mxu0 0.0
    %1570 = vmatpush1.msra.mxu0 0.0
    %1571 = vmatprep.subr.mxu0 0.0
    %1572 = vmatpush1.msra.mxu0 0.0
    %1573 = vmatprep.subr.mxu0 0.0
    %1574 = vmatpush1.msra.mxu0 0.0
    %1575 = vmatprep.subr.mxu0 0.0
    %1576 = vmatpush1.msra.mxu0 0.0
    %1577 = vmatprep.subr.mxu0 0.0
    %1578 = vmatpush1.msra.mxu0 0.0
    %1579 = vmatprep.subr.mxu0 0.0
    %1580 = vmatpush1.msra.mxu0 0.0
    %1581 = vmatprep.subr.mxu0 0.0
    %1582 = vmatpush1.msra.mxu0 0.0
    %1583 = vmatprep.subr.mxu0 0.0
    %1584 = vmatpush1.msra.mxu0 %v541
    %1585 = vmatprep.subr.mxu0 0.0
    %1586 = vmatpush2.msra.mxu0 0.0
    %1587 = vmatprep.subr.mxu0 0.0
    %1588 = vmatpush2.msra.mxu0 0.0
    %1589 = vmatprep.subr.mxu0 0.0
    %1590 = vmatpush2.msra.mxu0 0.0
    %1591 = vmatprep.subr.mxu0 0.0
    %1592 = vmatpush2.msra.mxu0 0.0
    %1593 = vmatprep.subr.mxu0 0.0
    %1594 = vmatpush2.msra.mxu0 0.0
    %1595 = vmatprep.subr.mxu0 0.0
    %1596 = vmatpush2.msra.mxu0 0.0
    %1597 = vmatprep.subr.mxu0 0.0
    %1598 = vmatpush2.msra.mxu0 0.0
    %1599 = vmatprep.subr.mxu0 0.0
    %1600 = vmatpush2.msra.mxu0 0.0
    %1601 = vmatprep.subr.mxu0 0.0
    %1602 = vmatpush2.msra.mxu0 0.0
    %1603 = vmatprep.subr.mxu0 0.0
    %1604 = vmatpush2.msra.mxu0 0.0
    %1605 = vmatprep.subr.mxu0 0.0
    %1606 = vmatpush2.msra.mxu0 0.0
    %1607 = vmatprep.subr.mxu0 0.0
    %1608 = vmatpush2.msra.mxu0 0.0
    %1609 = vmatprep.subr.mxu0 0.0
    %1610 = vmatpush2.msra.mxu0 0.0
    %1611 = vmatprep.subr.mxu0 0.0
    %1612 = vmatpush2.msra.mxu0 0.0
    %1613 = vmatprep.subr.mxu0 0.0
    %1614 = vmatpush2.msra.mxu0 0.0
    %1615 = vmatprep.subr.mxu0 0.0
    %1616 = vmatpush2.msra.mxu0 0.0
    %1617 = vmatprep.mubr.f32.mxu0 0.0
    %1618 = vmatmul.mubr.f32.gmra.mxu0 %v1548
    %v1619 = vpop.f32.mrf.mxu0
    %v1620 = vadd.f32 0.0, %v1619
    %v1621 = vpop.f32.mrf.mxu0
    %1622 = vmatprep.mubr.f32.mxu0 0.0
    %1623 = vmatmul.mubr.f32.gmra.mxu0 %v1551
    %v1624 = vpop.f32.mrf.mxu0
    %v1625 = vadd.f32 0.0, %v1624
    %v1626 = vpop.f32.mrf.mxu0
    %1627 = vdwg.mxu0
    %v1629 = vsel %vm1422, %v1533, 0
    %v1632 = vsel %vm1422, %v1534, 0
    %1634 = vmatprep.subr.mxu0 0.0
    %1635 = vmatpush1.msra.mxu0 0.0
    %1636 = vmatprep.subr.mxu0 0.0
    %1637 = vmatpush1.msra.mxu0 0.0
    %1638 = vmatprep.subr.mxu0 0.0
    %1639 = vmatpush1.msra.mxu0 0.0
    %1640 = vmatprep.subr.mxu0 0.0
    %1641 = vmatpush1.msra.mxu0 0.0
    %1642 = vmatprep.subr.mxu0 0.0
    %1643 = vmatpush1.msra.mxu0 0.0
    %1644 = vmatprep.subr.mxu0 0.0
    %1645 = vmatpush1.msra.mxu0 0.0
    %1646 = vmatprep.subr.mxu0 0.0
    %1647 = vmatpush1.msra.mxu0 0.0
    %1648 = vmatprep.subr.mxu0 0.0
    %1649 = vmatpush1.msra.mxu0 0.0
    %1650 = vmatprep.subr.mxu0 0.0
    %1651 = vmatpush1.msra.mxu0 0.0
    %1652 = vmatprep.subr.mxu0 0.0
    %1653 = vmatpush1.msra.mxu0 0.0
    %1654 = vmatprep.subr.mxu0 0.0
    %1655 = vmatpush1.msra.mxu0 0.0
    %1656 = vmatprep.subr.mxu0 0.0
    %1657 = vmatpush1.msra.mxu0 0.0
    %1658 = vmatprep.subr.mxu0 0.0
    %1659 = vmatpush1.msra.mxu0 0.0
    %1660 = vmatprep.subr.mxu0 0.0
    %1661 = vmatpush1.msra.mxu0 0.0
    %1662 = vmatprep.subr.mxu0 0.0
    %1663 = vmatpush1.msra.mxu0 0.0
    %1664 = vmatprep.subr.mxu0 0.0
    %1665 = vmatpush1.msra.mxu0 %v546
    %1666 = vmatprep.subr.mxu0 0.0
    %1667 = vmatpush2.msra.mxu0 0.0
    %1668 = vmatprep.subr.mxu0 0.0
    %1669 = vmatpush2.msra.mxu0 0.0
    %1670 = vmatprep.subr.mxu0 0.0
    %1671 = vmatpush2.msra.mxu0 0.0
    %1672 = vmatprep.subr.mxu0 0.0
    %1673 = vmatpush2.msra.mxu0 0.0
    %1674 = vmatprep.subr.mxu0 0.0
    %1675 = vmatpush2.msra.mxu0 0.0
    %1676 = vmatprep.subr.mxu0 0.0
    %1677 = vmatpush2.msra.mxu0 0.0
    %1678 = vmatprep.subr.mxu0 0.0
    %1679 = vmatpush2.msra.mxu0 0.0
    %1680 = vmatprep.subr.mxu0 0.0
    %1681 = vmatpush2.msra.mxu0 0.0
    %1682 = vmatprep.subr.mxu0 0.0
    %1683 = vmatpush2.msra.mxu0 0.0
    %1684 = vmatprep.subr.mxu0 0.0
    %1685 = vmatpush2.msra.mxu0 0.0
    %1686 = vmatprep.subr.mxu0 0.0
    %1687 = vmatpush2.msra.mxu0 0.0
    %1688 = vmatprep.subr.mxu0 0.0
    %1689 = vmatpush2.msra.mxu0 0.0
    %1690 = vmatprep.subr.mxu0 0.0
    %1691 = vmatpush2.msra.mxu0 0.0
    %1692 = vmatprep.subr.mxu0 0.0
    %1693 = vmatpush2.msra.mxu0 0.0
    %1694 = vmatprep.subr.mxu0 0.0
    %1695 = vmatpush2.msra.mxu0 0.0
    %1696 = vmatprep.subr.mxu0 0.0
    %1697 = vmatpush2.msra.mxu0 0.0
    %1698 = vmatprep.mubr.f32.mxu0 0.0
    %1699 = vmatmul.mubr.f32.gmra.mxu0 %v1629
    %v1700 = vpop.f32.mrf.mxu0
    %v1701 = vadd.f32 0.0, %v1700
    %v1702 = vpop.f32.mrf.mxu0
    %1703 = vmatprep.mubr.f32.mxu0 0.0
    %1704 = vmatmul.mubr.f32.gmra.mxu0 %v1632
    %v1705 = vpop.f32.mrf.mxu0
    %v1706 = vadd.f32 0.0, %v1705
    %v1707 = vpop.f32.mrf.mxu0
    %1708 = vdwg.mxu0
    %v1710 = vsel %vm1422, %v1535, 0
    %v1713 = vsel %vm1422, %v1536, 0
    %1715 = vmatprep.subr.mxu0 0.0
    %1716 = vmatpush1.msra.mxu0 0.0
    %1717 = vmatprep.subr.mxu0 0.0
    %1718 = vmatpush1.msra.mxu0 0.0
    %1719 = vmatprep.subr.mxu0 0.0
    %1720 = vmatpush1.msra.mxu0 0.0
    %1721 = vmatprep.subr.mxu0 0.0
    %1722 = vmatpush1.msra.mxu0 0.0
    %1723 = vmatprep.subr.mxu0 0.0
    %1724 = vmatpush1.msra.mxu0 0.0
    %1725 = vmatprep.subr.mxu0 0.0
    %1726 = vmatpush1.msra.mxu0 0.0
    %1727 = vmatprep.subr.mxu0 0.0
    %1728 = vmatpush1.msra.mxu0 0.0
    %1729 = vmatprep.subr.mxu0 0.0
    %1730 = vmatpush1.msra.mxu0 0.0
    %1731 = vmatprep.subr.mxu0 0.0
    %1732 = vmatpush1.msra.mxu0 0.0
    %1733 = vmatprep.subr.mxu0 0.0
    %1734 = vmatpush1.msra.mxu0 0.0
    %1735 = vmatprep.subr.mxu0 0.0
    %1736 = vmatpush1.msra.mxu0 0.0
    %1737 = vmatprep.subr.mxu0 0.0
    %1738 = vmatpush1.msra.mxu0 0.0
    %1739 = vmatprep.subr.mxu0 0.0
    %1740 = vmatpush1.msra.mxu0 0.0
    %1741 = vmatprep.subr.mxu0 0.0
    %1742 = vmatpush1.msra.mxu0 0.0
    %1743 = vmatprep.subr.mxu0 0.0
    %1744 = vmatpush1.msra.mxu0 0.0
    %1745 = vmatprep.subr.mxu0 0.0
    %1746 = vmatpush1.msra.mxu0 %v616
    %1747 = vmatprep.subr.mxu0 0.0
    %1748 = vmatpush2.msra.mxu0 0.0
    %1749 = vmatprep.subr.mxu0 0.0
    %1750 = vmatpush2.msra.mxu0 0.0
    %1751 = vmatprep.subr.mxu0 0.0
    %1752 = vmatpush2.msra.mxu0 0.0
    %1753 = vmatprep.subr.mxu0 0.0
    %1754 = vmatpush2.msra.mxu0 0.0
    %1755 = vmatprep.subr.mxu0 0.0
    %1756 = vmatpush2.msra.mxu0 0.0
    %1757 = vmatprep.subr.mxu0 0.0
    %1758 = vmatpush2.msra.mxu0 0.0
    %1759 = vmatprep.subr.mxu0 0.0
    %1760 = vmatpush2.msra.mxu0 0.0
    %1761 = vmatprep.subr.mxu0 0.0
    %1762 = vmatpush2.msra.mxu0 0.0
    %1763 = vmatprep.subr.mxu0 0.0
    %1764 = vmatpush2.msra.mxu0 0.0
    %1765 = vmatprep.subr.mxu0 0.0
    %1766 = vmatpush2.msra.mxu0 0.0
    %1767 = vmatprep.subr.mxu0 0.0
    %1768 = vmatpush2.msra.mxu0 0.0
    %1769 = vmatprep.subr.mxu0 0.0
    %1770 = vmatpush2.msra.mxu0 0.0
    %1771 = vmatprep.subr.mxu0 0.0
    %1772 = vmatpush2.msra.mxu0 0.0
    %1773 = vmatprep.subr.mxu0 0.0
    %1774 = vmatpush2.msra.mxu0 0.0
    %1775 = vmatprep.subr.mxu0 0.0
    %1776 = vmatpush2.msra.mxu0 0.0
    %1777 = vmatprep.subr.mxu0 0.0
    %1778 = vmatpush2.msra.mxu0 0.0
    %1779 = vmatprep.mubr.f32.mxu0 0.0
    %1780 = vmatmul.mubr.f32.gmra.mxu0 %v1710
    %v1781 = vpop.f32.mrf.mxu0
    %v1782 = vadd.f32 0.0, %v1781
    %v1783 = vpop.f32.mrf.mxu0
    %1784 = vmatprep.mubr.f32.mxu0 0.0
    %1785 = vmatmul.mubr.f32.gmra.mxu0 %v1713
    %v1786 = vpop.f32.mrf.mxu0
    %v1787 = vadd.f32 0.0, %v1786
    %v1788 = vpop.f32.mrf.mxu0
    %1789 = vdwg.mxu0
    %v1791 = vsel %vm1422, %v1537, 0
    %v1794 = vsel %vm1422, %v1538, 0
    %1796 = vmatprep.subr.mxu0 0.0
    %1797 = vmatpush1.msra.mxu0 0.0
    %1798 = vmatprep.subr.mxu0 0.0
    %1799 = vmatpush1.msra.mxu0 0.0
    %1800 = vmatprep.subr.mxu0 0.0
    %1801 = vmatpush1.msra.mxu0 0.0
    %1802 = vmatprep.subr.mxu0 0.0
    %1803 = vmatpush1.msra.mxu0 0.0
    %1804 = vmatprep.subr.mxu0 0.0
    %1805 = vmatpush1.msra.mxu0 0.0
    %1806 = vmatprep.subr.mxu0 0.0
    %1807 = vmatpush1.msra.mxu0 0.0
    %1808 = vmatprep.subr.mxu0 0.0
    %1809 = vmatpush1.msra.mxu0 0.0
    %1810 = vmatprep.subr.mxu0 0.0
    %1811 = vmatpush1.msra.mxu0 0.0
    %1812 = vmatprep.subr.mxu0 0.0
    %1813 = vmatpush1.msra.mxu0 0.0
    %1814 = vmatprep.subr.mxu0 0.0
    %1815 = vmatpush1.msra.mxu0 0.0
    %1816 = vmatprep.subr.mxu0 0.0
    %1817 = vmatpush1.msra.mxu0 0.0
    %1818 = vmatprep.subr.mxu0 0.0
    %1819 = vmatpush1.msra.mxu0 0.0
    %1820 = vmatprep.subr.mxu0 0.0
    %1821 = vmatpush1.msra.mxu0 0.0
    %1822 = vmatprep.subr.mxu0 0.0
    %1823 = vmatpush1.msra.mxu0 0.0
    %1824 = vmatprep.subr.mxu0 0.0
    %1825 = vmatpush1.msra.mxu0 0.0
    %1826 = vmatprep.subr.mxu0 0.0
    %1827 = vmatpush1.msra.mxu0 %v621
    %1828 = vmatprep.subr.mxu0 0.0
    %1829 = vmatpush2.msra.mxu0 0.0
    %1830 = vmatprep.subr.mxu0 0.0
    %1831 = vmatpush2.msra.mxu0 0.0
    %1832 = vmatprep.subr.mxu0 0.0
    %1833 = vmatpush2.msra.mxu0 0.0
    %1834 = vmatprep.subr.mxu0 0.0
    %1835 = vmatpush2.msra.mxu0 0.0
    %1836 = vmatprep.subr.mxu0 0.0
    %1837 = vmatpush2.msra.mxu0 0.0
    %1838 = vmatprep.subr.mxu0 0.0
    %1839 = vmatpush2.msra.mxu0 0.0
    %1840 = vmatprep.subr.mxu0 0.0
    %1841 = vmatpush2.msra.mxu0 0.0
    %1842 = vmatprep.subr.mxu0 0.0
    %1843 = vmatpush2.msra.mxu0 0.0
    %1844 = vmatprep.subr.mxu0 0.0
    %1845 = vmatpush2.msra.mxu0 0.0
    %1846 = vmatprep.subr.mxu0 0.0
    %1847 = vmatpush2.msra.mxu0 0.0
    %1848 = vmatprep.subr.mxu0 0.0
    %1849 = vmatpush2.msra.mxu0 0.0
    %1850 = vmatprep.subr.mxu0 0.0
    %1851 = vmatpush2.msra.mxu0 0.0
    %1852 = vmatprep.subr.mxu0 0.0
    %1853 = vmatpush2.msra.mxu0 0.0
    %1854 = vmatprep.subr.mxu0 0.0
    %1855 = vmatpush2.msra.mxu0 0.0
    %1856 = vmatprep.subr.mxu0 0.0
    %1857 = vmatpush2.msra.mxu0 0.0
    %1858 = vmatprep.subr.mxu0 0.0
    %1859 = vmatpush2.msra.mxu0 0.0
    %1860 = vmatprep.mubr.f32.mxu0 0.0
    %1861 = vmatmul.mubr.f32.gmra.mxu0 %v1791
    %v1862 = vpop.f32.mrf.mxu0
    %v1863 = vadd.f32 0.0, %v1862
    %v1864 = vpop.f32.mrf.mxu0
    %1865 = vmatprep.mubr.f32.mxu0 0.0
    %1866 = vmatmul.mubr.f32.gmra.mxu0 %v1794
    %v1867 = vpop.f32.mrf.mxu0
    %v1868 = vadd.f32 0.0, %v1867
    %v1869 = vpop.f32.mrf.mxu0
    %1870 = vdwg.mxu0
    %v1872 = vsel %vm1422, %v1539, 0
    %v1875 = vsel %vm1422, %v1540, 0
    %1877 = vmatprep.subr.mxu0 0.0
    %1878 = vmatpush1.msra.mxu0 0.0
    %1879 = vmatprep.subr.mxu0 0.0
    %1880 = vmatpush1.msra.mxu0 0.0
    %1881 = vmatprep.subr.mxu0 0.0
    %1882 = vmatpush1.msra.mxu0 0.0
    %1883 = vmatprep.subr.mxu0 0.0
    %1884 = vmatpush1.msra.mxu0 0.0
    %1885 = vmatprep.subr.mxu0 0.0
    %1886 = vmatpush1.msra.mxu0 0.0
    %1887 = vmatprep.subr.mxu0 0.0
    %1888 = vmatpush1.msra.mxu0 0.0
    %1889 = vmatprep.subr.mxu0 0.0
    %1890 = vmatpush1.msra.mxu0 0.0
    %1891 = vmatprep.subr.mxu0 0.0
    %1892 = vmatpush1.msra.mxu0 0.0
    %1893 = vmatprep.subr.mxu0 0.0
    %1894 = vmatpush1.msra.mxu0 0.0
    %1895 = vmatprep.subr.mxu0 0.0
    %1896 = vmatpush1.msra.mxu0 0.0
    %1897 = vmatprep.subr.mxu0 0.0
    %1898 = vmatpush1.msra.mxu0 0.0
    %1899 = vmatprep.subr.mxu0 0.0
    %1900 = vmatpush1.msra.mxu0 0.0
    %1901 = vmatprep.subr.mxu0 0.0
    %1902 = vmatpush1.msra.mxu0 0.0
    %1903 = vmatprep.subr.mxu0 0.0
    %1904 = vmatpush1.msra.mxu0 0.0
    %1905 = vmatprep.subr.mxu0 0.0
    %1906 = vmatpush1.msra.mxu0 0.0
    %1907 = vmatprep.subr.mxu0 0.0
    %1908 = vmatpush1.msra.mxu0 %v691
    %1909 = vmatprep.subr.mxu0 0.0
    %1910 = vmatpush2.msra.mxu0 0.0
    %1911 = vmatprep.subr.mxu0 0.0
    %1912 = vmatpush2.msra.mxu0 0.0
    %1913 = vmatprep.subr.mxu0 0.0
    %1914 = vmatpush2.msra.mxu0 0.0
    %1915 = vmatprep.subr.mxu0 0.0
    %1916 = vmatpush2.msra.mxu0 0.0
    %1917 = vmatprep.subr.mxu0 0.0
    %1918 = vmatpush2.msra.mxu0 0.0
    %1919 = vmatprep.subr.mxu0 0.0
    %1920 = vmatpush2.msra.mxu0 0.0
    %1921 = vmatprep.subr.mxu0 0.0
    %1922 = vmatpush2.msra.mxu0 0.0
    %1923 = vmatprep.subr.mxu0 0.0
    %1924 = vmatpush2.msra.mxu0 0.0
    %1925 = vmatprep.subr.mxu0 0.0
    %1926 = vmatpush2.msra.mxu0 0.0
    %1927 = vmatprep.subr.mxu0 0.0
    %1928 = vmatpush2.msra.mxu0 0.0
    %1929 = vmatprep.subr.mxu0 0.0
    %1930 = vmatpush2.msra.mxu0 0.0
    %1931 = vmatprep.subr.mxu0 0.0
    %1932 = vmatpush2.msra.mxu0 0.0
    %1933 = vmatprep.subr.mxu0 0.0
    %1934 = vmatpush2.msra.mxu0 0.0
    %1935 = vmatprep.subr.mxu0 0.0
    %1936 = vmatpush2.msra.mxu0 0.0
    %1937 = vmatprep.subr.mxu0 0.0
    %1938 = vmatpush2.msra.mxu0 0.0
    %1939 = vmatprep.subr.mxu0 0.0
    %1940 = vmatpush2.msra.mxu0 0.0
    %1941 = vmatprep.mubr.f32.mxu0 0.0
    %1942 = vmatmul.mubr.f32.gmra.mxu0 %v1872
    %v1943 = vpop.f32.mrf.mxu0
    %v1944 = vadd.f32 0.0, %v1943
    %v1945 = vpop.f32.mrf.mxu0
    %1946 = vmatprep.mubr.f32.mxu0 0.0
    %1947 = vmatmul.mubr.f32.gmra.mxu0 %v1875
    %v1948 = vpop.f32.mrf.mxu0
    %v1949 = vadd.f32 0.0, %v1948
    %v1950 = vpop.f32.mrf.mxu0
    %1951 = vdwg.mxu0
    %v1953 = vsel %vm1422, %v1541, 0
    %v1956 = vsel %vm1422, %v1542, 0
    %1958 = vmatprep.subr.mxu0 0.0
    %1959 = vmatpush1.msra.mxu0 0.0
    %1960 = vmatprep.subr.mxu0 0.0
    %1961 = vmatpush1.msra.mxu0 0.0
    %1962 = vmatprep.subr.mxu0 0.0
    %1963 = vmatpush1.msra.mxu0 0.0
    %1964 = vmatprep.subr.mxu0 0.0
    %1965 = vmatpush1.msra.mxu0 0.0
    %1966 = vmatprep.subr.mxu0 0.0
    %1967 = vmatpush1.msra.mxu0 0.0
    %1968 = vmatprep.subr.mxu0 0.0
    %1969 = vmatpush1.msra.mxu0 0.0
    %1970 = vmatprep.subr.mxu0 0.0
    %1971 = vmatpush1.msra.mxu0 0.0
    %1972 = vmatprep.subr.mxu0 0.0
    %1973 = vmatpush1.msra.mxu0 0.0
    %1974 = vmatprep.subr.mxu0 0.0
    %1975 = vmatpush1.msra.mxu0 0.0
    %1976 = vmatprep.subr.mxu0 0.0
    %1977 = vmatpush1.msra.mxu0 0.0
    %1978 = vmatprep.subr.mxu0 0.0
    %1979 = vmatpush1.msra.mxu0 0.0
    %1980 = vmatprep.subr.mxu0 0.0
    %1981 = vmatpush1.msra.mxu0 0.0
    %1982 = vmatprep.subr.mxu0 0.0
    %1983 = vmatpush1.msra.mxu0 0.0
    %1984 = vmatprep.subr.mxu0 0.0
    %1985 = vmatpush1.msra.mxu0 0.0
    %1986 = vmatprep.subr.mxu0 0.0
    %1987 = vmatpush1.msra.mxu0 0.0
    %1988 = vmatprep.subr.mxu0 0.0
    %1989 = vmatpush1.msra.mxu0 %v696
    %1990 = vmatprep.subr.mxu0 0.0
    %1991 = vmatpush2.msra.mxu0 0.0
    %1992 = vmatprep.subr.mxu0 0.0
    %1993 = vmatpush2.msra.mxu0 0.0
    %1994 = vmatprep.subr.mxu0 0.0
    %1995 = vmatpush2.msra.mxu0 0.0
    %1996 = vmatprep.subr.mxu0 0.0
    %1997 = vmatpush2.msra.mxu0 0.0
    %1998 = vmatprep.subr.mxu0 0.0
    %1999 = vmatpush2.msra.mxu0 0.0
    %2000 = vmatprep.subr.mxu0 0.0
    %2001 = vmatpush2.msra.mxu0 0.0
    %2002 = vmatprep.subr.mxu0 0.0
    %2003 = vmatpush2.msra.mxu0 0.0
    %2004 = vmatprep.subr.mxu0 0.0
    %2005 = vmatpush2.msra.mxu0 0.0
    %2006 = vmatprep.subr.mxu0 0.0
    %2007 = vmatpush2.msra.mxu0 0.0
    %2008 = vmatprep.subr.mxu0 0.0
    %2009 = vmatpush2.msra.mxu0 0.0
    %2010 = vmatprep.subr.mxu0 0.0
    %2011 = vmatpush2.msra.mxu0 0.0
    %2012 = vmatprep.subr.mxu0 0.0
    %2013 = vmatpush2.msra.mxu0 0.0
    %2014 = vmatprep.subr.mxu0 0.0
    %2015 = vmatpush2.msra.mxu0 0.0
    %2016 = vmatprep.subr.mxu0 0.0
    %2017 = vmatpush2.msra.mxu0 0.0
    %2018 = vmatprep.subr.mxu0 0.0
    %2019 = vmatpush2.msra.mxu0 0.0
    %2020 = vmatprep.subr.mxu0 0.0
    %2021 = vmatpush2.msra.mxu0 0.0
    %2022 = vmatprep.mubr.f32.mxu0 0.0
    %2023 = vmatmul.mubr.f32.gmra.mxu0 %v1953
    %v2024 = vpop.f32.mrf.mxu0
    %v2025 = vadd.f32 0.0, %v2024
    %v2026 = vpop.f32.mrf.mxu0
    %2027 = vmatprep.mubr.f32.mxu0 0.0
    %2028 = vmatmul.mubr.f32.gmra.mxu0 %v1956
    %v2029 = vpop.f32.mrf.mxu0
    %v2030 = vadd.f32 0.0, %v2029
    %v2031 = vpop.f32.mrf.mxu0
    %2032 = vdwg.mxu0
    %v2034 = vsel %vm1422, %v1543, 0
    %v2037 = vsel %vm1422, %v1544, 0
    %2039 = vmatprep.subr.mxu0 0.0
    %2040 = vmatpush1.msra.mxu0 0.0
    %2041 = vmatprep.subr.mxu0 0.0
    %2042 = vmatpush1.msra.mxu0 0.0
    %2043 = vmatprep.subr.mxu0 0.0
    %2044 = vmatpush1.msra.mxu0 0.0
    %2045 = vmatprep.subr.mxu0 0.0
    %2046 = vmatpush1.msra.mxu0 0.0
    %2047 = vmatprep.subr.mxu0 0.0
    %2048 = vmatpush1.msra.mxu0 0.0
    %2049 = vmatprep.subr.mxu0 0.0
    %2050 = vmatpush1.msra.mxu0 0.0
    %2051 = vmatprep.subr.mxu0 0.0
    %2052 = vmatpush1.msra.mxu0 0.0
    %2053 = vmatprep.subr.mxu0 0.0
    %2054 = vmatpush1.msra.mxu0 0.0
    %2055 = vmatprep.subr.mxu0 0.0
    %2056 = vmatpush1.msra.mxu0 0.0
    %2057 = vmatprep.subr.mxu0 0.0
    %2058 = vmatpush1.msra.mxu0 0.0
    %2059 = vmatprep.subr.mxu0 0.0
    %2060 = vmatpush1.msra.mxu0 0.0
    %2061 = vmatprep.subr.mxu0 0.0
    %2062 = vmatpush1.msra.mxu0 0.0
    %2063 = vmatprep.subr.mxu0 0.0
    %2064 = vmatpush1.msra.mxu0 0.0
    %2065 = vmatprep.subr.mxu0 0.0
    %2066 = vmatpush1.msra.mxu0 0.0
    %2067 = vmatprep.subr.mxu0 0.0
    %2068 = vmatpush1.msra.mxu0 0.0
    %2069 = vmatprep.subr.mxu0 0.0
    %2070 = vmatpush1.msra.mxu0 %v766
    %2071 = vmatprep.subr.mxu0 0.0
    %2072 = vmatpush2.msra.mxu0 0.0
    %2073 = vmatprep.subr.mxu0 0.0
    %2074 = vmatpush2.msra.mxu0 0.0
    %2075 = vmatprep.subr.mxu0 0.0
    %2076 = vmatpush2.msra.mxu0 0.0
    %2077 = vmatprep.subr.mxu0 0.0
    %2078 = vmatpush2.msra.mxu0 0.0
    %2079 = vmatprep.subr.mxu0 0.0
    %2080 = vmatpush2.msra.mxu0 0.0
    %2081 = vmatprep.subr.mxu0 0.0
    %2082 = vmatpush2.msra.mxu0 0.0
    %2083 = vmatprep.subr.mxu0 0.0
    %2084 = vmatpush2.msra.mxu0 0.0
    %2085 = vmatprep.subr.mxu0 0.0
    %2086 = vmatpush2.msra.mxu0 0.0
    %2087 = vmatprep.subr.mxu0 0.0
    %2088 = vmatpush2.msra.mxu0 0.0
    %2089 = vmatprep.subr.mxu0 0.0
    %2090 = vmatpush2.msra.mxu0 0.0
    %2091 = vmatprep.subr.mxu0 0.0
    %2092 = vmatpush2.msra.mxu0 0.0
    %2093 = vmatprep.subr.mxu0 0.0
    %2094 = vmatpush2.msra.mxu0 0.0
    %2095 = vmatprep.subr.mxu0 0.0
    %2096 = vmatpush2.msra.mxu0 0.0
    %2097 = vmatprep.subr.mxu0 0.0
    %2098 = vmatpush2.msra.mxu0 0.0
    %2099 = vmatprep.subr.mxu0 0.0
    %2100 = vmatpush2.msra.mxu0 0.0
    %2101 = vmatprep.subr.mxu0 0.0
    %2102 = vmatpush2.msra.mxu0 0.0
    %2103 = vmatprep.mubr.f32.mxu0 0.0
    %2104 = vmatmul.mubr.f32.gmra.mxu0 %v2034
    %v2105 = vpop.f32.mrf.mxu0
    %v2106 = vadd.f32 0.0, %v2105
    %v2107 = vpop.f32.mrf.mxu0
    %2108 = vmatprep.mubr.f32.mxu0 0.0
    %2109 = vmatmul.mubr.f32.gmra.mxu0 %v2037
    %v2110 = vpop.f32.mrf.mxu0
    %v2111 = vadd.f32 0.0, %v2110
    %v2112 = vpop.f32.mrf.mxu0
    %2113 = vdwg.mxu0
    %v2115 = vsel %vm1422, %v1545, 0
    %v2118 = vsel %vm1422, %v1546, 0
    %2120 = vmatprep.subr.mxu0 0.0
    %2121 = vmatpush1.msra.mxu0 0.0
    %2122 = vmatprep.subr.mxu0 0.0
    %2123 = vmatpush1.msra.mxu0 0.0
    %2124 = vmatprep.subr.mxu0 0.0
    %2125 = vmatpush1.msra.mxu0 0.0
    %2126 = vmatprep.subr.mxu0 0.0
    %2127 = vmatpush1.msra.mxu0 0.0
    %2128 = vmatprep.subr.mxu0 0.0
    %2129 = vmatpush1.msra.mxu0 0.0
    %2130 = vmatprep.subr.mxu0 0.0
    %2131 = vmatpush1.msra.mxu0 0.0
    %2132 = vmatprep.subr.mxu0 0.0
    %2133 = vmatpush1.msra.mxu0 0.0
    %2134 = vmatprep.subr.mxu0 0.0
    %2135 = vmatpush1.msra.mxu0 0.0
    %2136 = vmatprep.subr.mxu0 0.0
    %2137 = vmatpush1.msra.mxu0 0.0
    %2138 = vmatprep.subr.mxu0 0.0
    %2139 = vmatpush1.msra.mxu0 0.0
    %2140 = vmatprep.subr.mxu0 0.0
    %2141 = vmatpush1.msra.mxu0 0.0
    %2142 = vmatprep.subr.mxu0 0.0
    %2143 = vmatpush1.msra.mxu0 0.0
    %2144 = vmatprep.subr.mxu0 0.0
    %2145 = vmatpush1.msra.mxu0 0.0
    %2146 = vmatprep.subr.mxu0 0.0
    %2147 = vmatpush1.msra.mxu0 0.0
    %2148 = vmatprep.subr.mxu0 0.0
    %2149 = vmatpush1.msra.mxu0 0.0
    %2150 = vmatprep.subr.mxu0 0.0
    %2151 = vmatpush1.msra.mxu0 %v771
    %2152 = vmatprep.subr.mxu0 0.0
    %2153 = vmatpush2.msra.mxu0 0.0
    %2154 = vmatprep.subr.mxu0 0.0
    %2155 = vmatpush2.msra.mxu0 0.0
    %2156 = vmatprep.subr.mxu0 0.0
    %2157 = vmatpush2.msra.mxu0 0.0
    %2158 = vmatprep.subr.mxu0 0.0
    %2159 = vmatpush2.msra.mxu0 0.0
    %2160 = vmatprep.subr.mxu0 0.0
    %2161 = vmatpush2.msra.mxu0 0.0
    %2162 = vmatprep.subr.mxu0 0.0
    %2163 = vmatpush2.msra.mxu0 0.0
    %2164 = vmatprep.subr.mxu0 0.0
    %2165 = vmatpush2.msra.mxu0 0.0
    %2166 = vmatprep.subr.mxu0 0.0
    %2167 = vmatpush2.msra.mxu0 0.0
    %2168 = vmatprep.subr.mxu0 0.0
    %2169 = vmatpush2.msra.mxu0 0.0
    %2170 = vmatprep.subr.mxu0 0.0
    %2171 = vmatpush2.msra.mxu0 0.0
    %2172 = vmatprep.subr.mxu0 0.0
    %2173 = vmatpush2.msra.mxu0 0.0
    %2174 = vmatprep.subr.mxu0 0.0
    %2175 = vmatpush2.msra.mxu0 0.0
    %2176 = vmatprep.subr.mxu0 0.0
    %2177 = vmatpush2.msra.mxu0 0.0
    %2178 = vmatprep.subr.mxu0 0.0
    %2179 = vmatpush2.msra.mxu0 0.0
    %2180 = vmatprep.subr.mxu0 0.0
    %2181 = vmatpush2.msra.mxu0 0.0
    %2182 = vmatprep.subr.mxu0 0.0
    %2183 = vmatpush2.msra.mxu0 0.0
    %2184 = vmatprep.mubr.f32.mxu0 0.0
    %2185 = vmatmul.mubr.f32.gmra.mxu0 %v2115
    %v2186 = vpop.f32.mrf.mxu0
    %v2187 = vadd.f32 0.0, %v2186
    %v2188 = vpop.f32.mrf.mxu0
    %2189 = vmatprep.mubr.f32.mxu0 0.0
    %2190 = vmatmul.mubr.f32.gmra.mxu0 %v2118
    %v2191 = vpop.f32.mrf.mxu0
    %v2192 = vadd.f32 0.0, %v2191
    %v2193 = vpop.f32.mrf.mxu0
    %2194 = vdwg.mxu0
    %v2195 = vsel %vm115, %v1620, 0.0
    %v2196 = vsel %vm115, %v1782, 0.0
    %v2197 = vadd.f32 %v2195, %v2196
    %v2198 = vsel %vm115, %v1944, 0.0
    %v2199 = vadd.f32 %v2197, %v2198
    %v2200 = vsel %vm115, %v2106, 0.0
    %v2201 = vadd.f32 %v2199, %v2200
    %v2202 = vsel %vm115, %v1625, 0.0
    %v2203 = vsel %vm115, %v1787, 0.0
    %v2204 = vadd.f32 %v2202, %v2203
    %v2205 = vsel %vm115, %v1949, 0.0
    %v2206 = vadd.f32 %v2204, %v2205
    %v2207 = vsel %vm115, %v2111, 0.0
    %v2208 = vadd.f32 %v2206, %v2207
    %v2209 = vsel %vm115, %v1701, 0.0
    %v2210 = vsel %vm115, %v1863, 0.0
    %v2211 = vadd.f32 %v2209, %v2210
    %v2212 = vsel %vm115, %v2025, 0.0
    %v2213 = vadd.f32 %v2211, %v2212
    %v2214 = vsel %vm115, %v2187, 0.0
    %v2215 = vadd.f32 %v2213, %v2214
    %v2216 = vsel %vm115, %v1706, 0.0
    %v2217 = vsel %vm115, %v1868, 0.0
    %v2218 = vadd.f32 %v2216, %v2217
    %v2219 = vsel %vm115, %v2030, 0.0
    %v2220 = vadd.f32 %v2218, %v2219
    %v2221 = vsel %vm115, %v2192, 0.0
    %v2222 = vadd.f32 %v2220, %v2221
    %v2224 = vlaneseq
    %v2225 = vshrl.u32 %v2224, 7
    %v2226 = vsub.s32 0, %v2225
    %v2227 = vrot.slane %v108, %v2226
    %v2229 = vadd.f32 %v2201, %v2227
    %v2230 = vadd.f32 %v2208, %v2227
    %v2231 = vadd.f32 %v2215, %v2227
    %v2232 = vadd.f32 %v2222, %v2227
    %2233 = vst.msk [vmem:[#allocation10] sm:$0xff] %vm115, %v2229
    %2234 = vst.msk [vmem:[#allocation10 + $0x8] sm:$0xff] %vm115, %v2230
    %2235 = vst.msk [vmem:[#allocation10 + $0x10] sm:$0xff] %vm115, %v2231
    %2236 = vst.msk [vmem:[#allocation10 + $0x18] sm:$0xff] %vm115, %v2232
    // Predicated region
    $region38: #{tpu_custom_call.1} parent=1 // pred_check
      _
    $region39: #{tpu_custom_call.1} parent=1 // pred_check_branch
      %2238 = sbr.rel (0) target = $region41
    $region40: #{tpu_custom_call.1} parent=1 // pred_region
      %s2240 = ssub.s32 512, 512
      %2241 = vsyncadd [#allocation4], %s2240
      %s2242 = sshll.u32 [#allocation10], 4
      %s2243 = int_to_ptr.vmem [resolvable:$true] %s2242
      %2248 = dma.vmem_to_hbm [thread:$0]  %s2243, 512, %s5, [#allocation4], 128, 128, 8
    $region41: #{tpu_custom_call.1} parent=1 // pred_fallthru
      _
    // Predicated region
    $region42: #{tpu_custom_call.1} parent=1 // pred_check
      _
    $region43: #{tpu_custom_call.1} parent=1 // pred_check_branch
      %2250 = sbr.rel (0) target = $region45
    $region44: #{tpu_custom_call.1} parent=1 // pred_region
      %2251 = dma.done [#allocation4], 512
    $region45: #{tpu_custom_call.1} parent=1 // pred_fallthru
      _
    %2252 = vsyncpa [#allocation3], 1
    %2253 = vsyncpa [#allocation6], 1
    %2254 = vsyncpa [#allocation9], 1
    %2255 = vsyncpa [#allocation4], 1

</llo_original>
